<compile_context>
chip_gen: v7x
topology: tpu7x:2x2x1
jax: 0.10.0
libtpu: 0.0.40
codegen_flags: <defaults>
</compile_context>

<pallas_src>
import functools

import jax
import jax.numpy as jnp
from jax.experimental import pallas as pl
from jax.experimental.pallas import tpu as pltpu


# ----------------------------------------------------------------------------
# Kernel
# ----------------------------------------------------------------------------
def make_rnn_regressor_kernel(seq_len, layout):
    """layout: tuple of (row_offset, rows, cols) in order
       w_ih, w_hh, b_rnn, [fc_w, fc_b]*n_fc, w_out, b_out  (all in one slab)."""
    n_fc = (len(layout) - 5) // 2
    wih_l, whh_l, b_l = layout[0], layout[1], layout[2]
    fc_l = [(layout[3 + 2 * i], layout[4 + 2 * i]) for i in range(n_fc)]
    wo_l, bo_l = layout[-2], layout[-1]

    def kernel(x_ref, p_ref, out_ref):
        B = x_ref.shape[0]

        def load(entry):
            off, r, c = entry                     # static Python ints
            return p_ref[off:off + r, 0:c]        # static slice of the slab

        wih = load(wih_l)                         # (I, H)
        whh = load(whh_l)                         # (H, H)
        b_rnn = load(b_l)                         # (1, H)  (b_ih + b_hh folded)
        H = whh.shape[0]

        # Per-step input projections.  They do not depend on h, so all T of
        # these matmuls sit OFF the serial recurrence chain and the scheduler
        # overlaps them with the W_hh matmuls / tanh below.
        x = x_ref[...]                            # (B, T, I), batch_first
        xps = [
            jnp.dot(x[:, t, :], wih, preferred_element_type=jnp.float32) + b_rnn
            for t in range(seq_len)
        ]

        # Serial recurrence: h_t = tanh(xproj_t + h_{t-1} @ W_hh).
        # Fully unrolled (T static & tiny) -> static slices, full scheduler
        # visibility across steps.
        h = jnp.zeros((B, H), jnp.float32)
        for t in range(seq_len):
            h = jnp.tanh(xps[t] + jnp.dot(h, whh, preferred_element_type=jnp.float32))

        # MLP head on the last hidden state.
        out = h
        for (wl, bl) in fc_l:
            out = jnp.maximum(
                jnp.dot(out, load(wl), preferred_element_type=jnp.float32) + load(bl),
                0.0)
        out_ref[...] = (jnp.dot(out, load(wo_l), preferred_element_type=jnp.float32)
                        + load(bo_l))

    return kernel


# ----------------------------------------------------------------------------
# Parameter init (PyTorch-style uniform(-1/sqrt(fan), 1/sqrt(fan)))
# ----------------------------------------------------------------------------
def init_params(key, input_size, hidden_sizes, output_size):
    params = {}
    h0 = hidden_sizes[0]
    k = 1.0 / jnp.sqrt(h0)
    keys = jax.random.split(key, 4 + 2 * (len(hidden_sizes) - 1) + 2)
    ki = iter(range(len(keys)))
    # RNN weights stored transposed: (in, out) so the kernel does y = x @ W + b.
    params["w_ih"] = jax.random.uniform(keys[next(ki)], (input_size, h0), jnp.float32, -k, k)
    params["w_hh"] = jax.random.uniform(keys[next(ki)], (h0, h0), jnp.float32, -k, k)
    params["b_ih"] = jax.random.uniform(keys[next(ki)], (1, h0), jnp.float32, -k, k)
    params["b_hh"] = jax.random.uniform(keys[next(ki)], (1, h0), jnp.float32, -k, k)
    fc = []
    for i in range(len(hidden_sizes) - 1):
        fan_in = hidden_sizes[i]
        kk = 1.0 / jnp.sqrt(fan_in)
        w = jax.random.uniform(keys[next(ki)], (hidden_sizes[i], hidden_sizes[i + 1]),
                               jnp.float32, -kk, kk)
        b = jax.random.uniform(keys[next(ki)], (1, hidden_sizes[i + 1]),
                               jnp.float32, -kk, kk)
        fc.append((w, b))
    params["fc"] = fc
    fan_in = hidden_sizes[-1]
    kk = 1.0 / jnp.sqrt(fan_in)
    params["w_out"] = jax.random.uniform(keys[next(ki)], (hidden_sizes[-1], output_size),
                                         jnp.float32, -kk, kk)
    params["b_out"] = jax.random.uniform(keys[next(ki)], (1, output_size),
                                         jnp.float32, -kk, kk)
    return params


def pack_params(params):
    """One-time repack of all parameters into a single f32 slab.

    Returns (slab, layout) where layout is a hashable tuple of
    (row_offset, rows, cols) triples in kernel order:
      w_ih, w_hh, b_rnn(=b_ih+b_hh), [fc_w, fc_b]*n_fc, w_out, b_out.
    Row offsets are 8-aligned so every in-kernel slice starts on a sublane tile.
    """
    mats = [params["w_ih"], params["w_hh"], params["b_ih"] + params["b_hh"]]
    for (w, b) in params["fc"]:
        mats += [w, b]
    mats += [params["w_out"], params["b_out"]]

    cols = max(int(m.shape[1]) for m in mats)
    blocks, layout, off = [], [], 0
    for m in mats:
        r, c = int(m.shape[0]), int(m.shape[1])
        rp = ((r + 7) // 8) * 8
        buf = jnp.zeros((rp, cols), jnp.float32).at[:r, :c].set(m)
        blocks.append(buf)
        layout.append((off, r, c))
        off += rp
    slab = jnp.concatenate(blocks, axis=0)
    return slab, tuple(layout)


# ----------------------------------------------------------------------------
# Forward wrapper
# ----------------------------------------------------------------------------
@functools.partial(jax.jit, static_argnames=("layout", "output_size"))
def rnn_regressor_forward(x_btf, param_slab, layout, output_size):
    """x_btf: (B, T, input_size) float32, batch_first like PyTorch."""
    B, T, I = x_btf.shape
    n_fc = (len(layout) - 5) // 2
    H = layout[1][1]

    # Advisory cost hint so XLA can schedule surrounding ops around the kernel.
    flops = 2 * B * T * I * H + 2 * T * B * H * H
    dims = [H] + [layout[3 + 2 * i][2] for i in range(n_fc)] + [output_size]
    for d_in, d_out in zip(dims[:-1], dims[1:]):
        flops += 2 * B * d_in * d_out
    bytes_accessed = 4 * (int(x_btf.size) + int(param_slab.size) + B * output_size)
    cost = pl.CostEstimate(flops=flops, transcendentals=T * B * H,
                           bytes_accessed=bytes_accessed)

    kernel = make_rnn_regressor_kernel(T, layout)
    vmem = pltpu.MemorySpace.VMEM

    # Tiny footprint (~10 KB) -> single ungridded invocation, both inputs
    # resident as full-array VMEM blocks (2 DMAs total).
    return pl.pallas_call(
        kernel,
        out_shape=jax.ShapeDtypeStruct((B, output_size), jnp.float32),
        in_specs=[pl.BlockSpec(memory_space=vmem),
                  pl.BlockSpec(memory_space=vmem)],
        out_specs=pl.BlockSpec(memory_space=vmem),
        cost_estimate=cost,
    )(x_btf, param_slab)


# ----------------------------------------------------------------------------
# Pure-JAX reference (PyTorch RNNRegressor.forward semantics)
# ----------------------------------------------------------------------------
def reference_forward(x_btf, params):
    B, T, I = x_btf.shape
    H = params["w_hh"].shape[0]
    h = jnp.zeros((B, H), jnp.float32)
    for t in range(T):
        h = jnp.tanh(x_btf[:, t, :] @ params["w_ih"] + h @ params["w_hh"]
                     + params["b_ih"] + params["b_hh"])
    out = h
    for (w, b) in params["fc"]:
        out = jnp.maximum(out @ w + b, 0.0)
    return out @ params["w_out"] + params["b_out"]


if __name__ == "__main__":
    # Small shapes implied by the module: (batch, seq, input_size) with
    # hidden_sizes=[32, 16] and output_size=1.
    B, T, INPUT = 2, 8, 8
    HIDDEN = [32, 16]
    OUT = 1

    key = jax.random.PRNGKey(0)
    kx, kp = jax.random.split(key)
    x = jax.random.normal(kx, (B, T, INPUT), jnp.float32)
    params = init_params(kp, INPUT, HIDDEN, OUT)
    slab, layout = pack_params(params)          # one-time repack at init

    y = rnn_regressor_forward(x, slab, layout, OUT)
    y = jax.block_until_ready(y)

    y_ref = reference_forward(x, params)
    assert y.shape == (B, OUT), y.shape
    assert jnp.allclose(y, y_ref, atol=1e-5, rtol=1e-5), (y, y_ref)

    print("KERNEL_OK")
</pallas_src>

<mosaic_0001>
module attributes {stable_mosaic.version = 11 : i64} {
  func.func @kernel(%arg0: memref<2x8x8xf32, #tpu.memory_space<vmem>>, %arg1: memref<112x32xf32, #tpu.memory_space<vmem>>, %arg2: memref<2x1xf32, #tpu.memory_space<vmem>>) attributes {dimension_semantics = [], scalar_prefetch = 0 : i64, scratch_operands = 0 : i64, tpu.core_type = #tpu.core_type<tc>} {
    %c0 = arith.constant 0 : index
    %c0_0 = arith.constant 0 : index
    %0 = vector.load %arg1[%c0, %c0_0] : memref<112x32xf32, #tpu.memory_space<vmem>>, vector<8x32xf32>
    %c8 = arith.constant 8 : index
    %c0_1 = arith.constant 0 : index
    %1 = vector.load %arg1[%c8, %c0_1] : memref<112x32xf32, #tpu.memory_space<vmem>>, vector<32x32xf32>
    %c40 = arith.constant 40 : index
    %c0_2 = arith.constant 0 : index
    %2 = vector.load %arg1[%c40, %c0_2] : memref<112x32xf32, #tpu.memory_space<vmem>>, vector<1x32xf32>
    %c0_3 = arith.constant 0 : index
    %c0_4 = arith.constant 0 : index
    %c0_5 = arith.constant 0 : index
    %3 = vector.load %arg0[%c0_3, %c0_4, %c0_5] : memref<2x8x8xf32, #tpu.memory_space<vmem>>, vector<2x8x8xf32>
    %4 = vector.extract_strided_slice %3 {offsets = [0, 0, 0], sizes = [2, 1, 8], strides = [1, 1, 1]} : vector<2x8x8xf32> to vector<2x1x8xf32>
    %5 = vector.shape_cast %4 : vector<2x1x8xf32> to vector<2x8xf32>
    %cst = arith.constant dense<0.000000e+00> : vector<2x32xf32>
    %6 = tpu.matmul %5, %0, %cst {dimension_numbers = #tpu.dot_dimension_numbers<[1], [0], [0], [1], [0, 0, 1, 1], [], []>} : vector<2x8xf32>, vector<8x32xf32>, vector<2x32xf32> -> vector<2x32xf32>
    %7 = vector.broadcast %2 : vector<1x32xf32> to vector<2x32xf32>
    %8 = arith.addf %6, %7 : vector<2x32xf32>
    %9 = vector.extract_strided_slice %3 {offsets = [0, 1, 0], sizes = [2, 1, 8], strides = [1, 1, 1]} : vector<2x8x8xf32> to vector<2x1x8xf32>
    %10 = vector.shape_cast %9 : vector<2x1x8xf32> to vector<2x8xf32>
    %cst_6 = arith.constant dense<0.000000e+00> : vector<2x32xf32>
    %11 = tpu.matmul %10, %0, %cst_6 {dimension_numbers = #tpu.dot_dimension_numbers<[1], [0], [0], [1], [0, 0, 1, 1], [], []>} : vector<2x8xf32>, vector<8x32xf32>, vector<2x32xf32> -> vector<2x32xf32>
    %12 = vector.broadcast %2 : vector<1x32xf32> to vector<2x32xf32>
    %13 = arith.addf %11, %12 : vector<2x32xf32>
    %14 = vector.extract_strided_slice %3 {offsets = [0, 2, 0], sizes = [2, 1, 8], strides = [1, 1, 1]} : vector<2x8x8xf32> to vector<2x1x8xf32>
    %15 = vector.shape_cast %14 : vector<2x1x8xf32> to vector<2x8xf32>
    %cst_7 = arith.constant dense<0.000000e+00> : vector<2x32xf32>
    %16 = tpu.matmul %15, %0, %cst_7 {dimension_numbers = #tpu.dot_dimension_numbers<[1], [0], [0], [1], [0, 0, 1, 1], [], []>} : vector<2x8xf32>, vector<8x32xf32>, vector<2x32xf32> -> vector<2x32xf32>
    %17 = vector.broadcast %2 : vector<1x32xf32> to vector<2x32xf32>
    %18 = arith.addf %16, %17 : vector<2x32xf32>
    %19 = vector.extract_strided_slice %3 {offsets = [0, 3, 0], sizes = [2, 1, 8], strides = [1, 1, 1]} : vector<2x8x8xf32> to vector<2x1x8xf32>
    %20 = vector.shape_cast %19 : vector<2x1x8xf32> to vector<2x8xf32>
    %cst_8 = arith.constant dense<0.000000e+00> : vector<2x32xf32>
    %21 = tpu.matmul %20, %0, %cst_8 {dimension_numbers = #tpu.dot_dimension_numbers<[1], [0], [0], [1], [0, 0, 1, 1], [], []>} : vector<2x8xf32>, vector<8x32xf32>, vector<2x32xf32> -> vector<2x32xf32>
    %22 = vector.broadcast %2 : vector<1x32xf32> to vector<2x32xf32>
    %23 = arith.addf %21, %22 : vector<2x32xf32>
    %24 = vector.extract_strided_slice %3 {offsets = [0, 4, 0], sizes = [2, 1, 8], strides = [1, 1, 1]} : vector<2x8x8xf32> to vector<2x1x8xf32>
    %25 = vector.shape_cast %24 : vector<2x1x8xf32> to vector<2x8xf32>
    %cst_9 = arith.constant dense<0.000000e+00> : vector<2x32xf32>
    %26 = tpu.matmul %25, %0, %cst_9 {dimension_numbers = #tpu.dot_dimension_numbers<[1], [0], [0], [1], [0, 0, 1, 1], [], []>} : vector<2x8xf32>, vector<8x32xf32>, vector<2x32xf32> -> vector<2x32xf32>
    %27 = vector.broadcast %2 : vector<1x32xf32> to vector<2x32xf32>
    %28 = arith.addf %26, %27 : vector<2x32xf32>
    %29 = vector.extract_strided_slice %3 {offsets = [0, 5, 0], sizes = [2, 1, 8], strides = [1, 1, 1]} : vector<2x8x8xf32> to vector<2x1x8xf32>
    %30 = vector.shape_cast %29 : vector<2x1x8xf32> to vector<2x8xf32>
    %cst_10 = arith.constant dense<0.000000e+00> : vector<2x32xf32>
    %31 = tpu.matmul %30, %0, %cst_10 {dimension_numbers = #tpu.dot_dimension_numbers<[1], [0], [0], [1], [0, 0, 1, 1], [], []>} : vector<2x8xf32>, vector<8x32xf32>, vector<2x32xf32> -> vector<2x32xf32>
    %32 = vector.broadcast %2 : vector<1x32xf32> to vector<2x32xf32>
    %33 = arith.addf %31, %32 : vector<2x32xf32>
    %34 = vector.extract_strided_slice %3 {offsets = [0, 6, 0], sizes = [2, 1, 8], strides = [1, 1, 1]} : vector<2x8x8xf32> to vector<2x1x8xf32>
    %35 = vector.shape_cast %34 : vector<2x1x8xf32> to vector<2x8xf32>
    %cst_11 = arith.constant dense<0.000000e+00> : vector<2x32xf32>
    %36 = tpu.matmul %35, %0, %cst_11 {dimension_numbers = #tpu.dot_dimension_numbers<[1], [0], [0], [1], [0, 0, 1, 1], [], []>} : vector<2x8xf32>, vector<8x32xf32>, vector<2x32xf32> -> vector<2x32xf32>
    %37 = vector.broadcast %2 : vector<1x32xf32> to vector<2x32xf32>
    %38 = arith.addf %36, %37 : vector<2x32xf32>
    %39 = vector.extract_strided_slice %3 {offsets = [0, 7, 0], sizes = [2, 1, 8], strides = [1, 1, 1]} : vector<2x8x8xf32> to vector<2x1x8xf32>
    %40 = vector.shape_cast %39 : vector<2x1x8xf32> to vector<2x8xf32>
    %cst_12 = arith.constant dense<0.000000e+00> : vector<2x32xf32>
    %41 = tpu.matmul %40, %0, %cst_12 {dimension_numbers = #tpu.dot_dimension_numbers<[1], [0], [0], [1], [0, 0, 1, 1], [], []>} : vector<2x8xf32>, vector<8x32xf32>, vector<2x32xf32> -> vector<2x32xf32>
    %42 = vector.broadcast %2 : vector<1x32xf32> to vector<2x32xf32>
    %43 = arith.addf %41, %42 : vector<2x32xf32>
    %cst_13 = arith.constant 0.000000e+00 : f32
    %44 = vector.broadcast %cst_13 : f32 to vector<2x32xf32>
    %cst_14 = arith.constant dense<0.000000e+00> : vector<2x32xf32>
    %45 = tpu.matmul %44, %1, %cst_14 {dimension_numbers = #tpu.dot_dimension_numbers<[1], [0], [0], [1], [0, 0, 1, 1], [], []>} : vector<2x32xf32>, vector<32x32xf32>, vector<2x32xf32> -> vector<2x32xf32>
    %46 = arith.addf %8, %45 : vector<2x32xf32>
    %47 = math.tanh %46 : vector<2x32xf32>
    %cst_15 = arith.constant dense<0.000000e+00> : vector<2x32xf32>
    %48 = tpu.matmul %47, %1, %cst_15 {dimension_numbers = #tpu.dot_dimension_numbers<[1], [0], [0], [1], [0, 0, 1, 1], [], []>} : vector<2x32xf32>, vector<32x32xf32>, vector<2x32xf32> -> vector<2x32xf32>
    %49 = arith.addf %13, %48 : vector<2x32xf32>
    %50 = math.tanh %49 : vector<2x32xf32>
    %cst_16 = arith.constant dense<0.000000e+00> : vector<2x32xf32>
    %51 = tpu.matmul %50, %1, %cst_16 {dimension_numbers = #tpu.dot_dimension_numbers<[1], [0], [0], [1], [0, 0, 1, 1], [], []>} : vector<2x32xf32>, vector<32x32xf32>, vector<2x32xf32> -> vector<2x32xf32>
    %52 = arith.addf %18, %51 : vector<2x32xf32>
    %53 = math.tanh %52 : vector<2x32xf32>
    %cst_17 = arith.constant dense<0.000000e+00> : vector<2x32xf32>
    %54 = tpu.matmul %53, %1, %cst_17 {dimension_numbers = #tpu.dot_dimension_numbers<[1], [0], [0], [1], [0, 0, 1, 1], [], []>} : vector<2x32xf32>, vector<32x32xf32>, vector<2x32xf32> -> vector<2x32xf32>
    %55 = arith.addf %23, %54 : vector<2x32xf32>
    %56 = math.tanh %55 : vector<2x32xf32>
    %cst_18 = arith.constant dense<0.000000e+00> : vector<2x32xf32>
    %57 = tpu.matmul %56, %1, %cst_18 {dimension_numbers = #tpu.dot_dimension_numbers<[1], [0], [0], [1], [0, 0, 1, 1], [], []>} : vector<2x32xf32>, vector<32x32xf32>, vector<2x32xf32> -> vector<2x32xf32>
    %58 = arith.addf %28, %57 : vector<2x32xf32>
    %59 = math.tanh %58 : vector<2x32xf32>
    %cst_19 = arith.constant dense<0.000000e+00> : vector<2x32xf32>
    %60 = tpu.matmul %59, %1, %cst_19 {dimension_numbers = #tpu.dot_dimension_numbers<[1], [0], [0], [1], [0, 0, 1, 1], [], []>} : vector<2x32xf32>, vector<32x32xf32>, vector<2x32xf32> -> vector<2x32xf32>
    %61 = arith.addf %33, %60 : vector<2x32xf32>
    %62 = math.tanh %61 : vector<2x32xf32>
    %cst_20 = arith.constant dense<0.000000e+00> : vector<2x32xf32>
    %63 = tpu.matmul %62, %1, %cst_20 {dimension_numbers = #tpu.dot_dimension_numbers<[1], [0], [0], [1], [0, 0, 1, 1], [], []>} : vector<2x32xf32>, vector<32x32xf32>, vector<2x32xf32> -> vector<2x32xf32>
    %64 = arith.addf %38, %63 : vector<2x32xf32>
    %65 = math.tanh %64 : vector<2x32xf32>
    %cst_21 = arith.constant dense<0.000000e+00> : vector<2x32xf32>
    %66 = tpu.matmul %65, %1, %cst_21 {dimension_numbers = #tpu.dot_dimension_numbers<[1], [0], [0], [1], [0, 0, 1, 1], [], []>} : vector<2x32xf32>, vector<32x32xf32>, vector<2x32xf32> -> vector<2x32xf32>
    %67 = arith.addf %43, %66 : vector<2x32xf32>
    %68 = math.tanh %67 : vector<2x32xf32>
    %c48 = arith.constant 48 : index
    %c0_22 = arith.constant 0 : index
    %69 = vector.load %arg1[%c48, %c0_22] : memref<112x32xf32, #tpu.memory_space<vmem>>, vector<32x16xf32>
    %cst_23 = arith.constant dense<0.000000e+00> : vector<2x16xf32>
    %70 = tpu.matmul %68, %69, %cst_23 {dimension_numbers = #tpu.dot_dimension_numbers<[1], [0], [0], [1], [0, 0, 1, 1], [], []>} : vector<2x32xf32>, vector<32x16xf32>, vector<2x16xf32> -> vector<2x16xf32>
    %c80 = arith.constant 80 : index
    %c0_24 = arith.constant 0 : index
    %71 = vector.load %arg1[%c80, %c0_24] : memref<112x32xf32, #tpu.memory_space<vmem>>, vector<1x16xf32>
    %72 = vector.broadcast %71 : vector<1x16xf32> to vector<2x16xf32>
    %73 = arith.addf %70, %72 : vector<2x16xf32>
    %cst_25 = arith.constant 0.000000e+00 : f32
    %74 = vector.broadcast %cst_25 : f32 to vector<2x16xf32>
    %75 = arith.maximumf %73, %74 : vector<2x16xf32>
    %c88 = arith.constant 88 : index
    %c0_26 = arith.constant 0 : index
    %76 = vector.load %arg1[%c88, %c0_26] : memref<112x32xf32, #tpu.memory_space<vmem>>, vector<16x1xf32>
    %cst_27 = arith.constant dense<0.000000e+00> : vector<2x1xf32>
    %77 = tpu.matmul %75, %76, %cst_27 {dimension_numbers = #tpu.dot_dimension_numbers<[1], [0], [0], [1], [0, 0, 1, 1], [], []>} : vector<2x16xf32>, vector<16x1xf32>, vector<2x1xf32> -> vector<2x1xf32>
    %c104 = arith.constant 104 : index
    %c0_28 = arith.constant 0 : index
    %78 = vector.load %arg1[%c104, %c0_28] : memref<112x32xf32, #tpu.memory_space<vmem>>, vector<1x1xf32>
    %79 = vector.broadcast %78 : vector<1x1xf32> to vector<2x1xf32>
    %80 = arith.addf %77, %79 : vector<2x1xf32>
    %c0_29 = arith.constant 0 : index
    %c0_30 = arith.constant 0 : index
    %81 = vector.load %arg2[%c0_29, %c0_30] : memref<2x1xf32, #tpu.memory_space<vmem>>, vector<2x1xf32>
    tpu.vector_store %arg2[%c0_29, %c0_30], %80 {strides = array<i32>} : memref<2x1xf32, #tpu.memory_space<vmem>>, vector<2x1xf32>,
    return
  }
}

</mosaic_0001>

<llo_original>
// kernel: rnn_regressor_forward.1
$region0: #{rnn_regressor_forward.1}
  #allocation0 [shape = 'u32[]', space=smem, size = 0x4, offset = 0x4, fixed_abs, tag = 'smem constant byte address 0x4 - core index']
  #allocation1 [shape = 'u32[144,128]{1,0:T(1,128)}', space=vmem, size = 0x12000, scoped, tag = 'internal scratch']
  %s0 = inlined_call_operand.vmem [shape: f32[2,8,8], index: 0, kind: input, shape index: {}]
  %s1 = inlined_call_operand.vmem [shape: f32[112,32], index: 1, kind: input, shape index: {}]
  %s2 = inlined_call_operand.vmem [shape: f32[2,1], index: 2, kind: output, shape index: {}]
  %s3 = sld [smem:[#allocation0]]
  $region18: #{rnn_regressor_forward.1} parent=0
    _
  %s5 = ssub.s32 1, %s3
  %s6 = scalar_select 0, %s5, %s3
  // Predicated region
  $region2: #{rnn_regressor_forward.1} parent=0 // pred_check
    _
  $region3: #{rnn_regressor_forward.1} parent=0 // pred_check_branch
    %8 = sbr.rel (0) target = $region5
  $region4: #{rnn_regressor_forward.1} parent=0 // pred_region
    _
  $region5: #{rnn_regressor_forward.1} parent=0 // pred_fallthru
    _
  // Predicated region
  $region6: #{rnn_regressor_forward.1} parent=0 // pred_check
    _
  $region7: #{rnn_regressor_forward.1} parent=0 // pred_check_branch
    %10 = sbr.rel (0) target = $region9
  $region8: #{rnn_regressor_forward.1} parent=0 // pred_region
    _
  $region9: #{rnn_regressor_forward.1} parent=0 // pred_fallthru
    _
  %v11 = vld [vmem:[%s1] sm:$0xff]
  %v12 = vld [vmem:[%s1 + $0x8] sm:$0xff]
  %v13 = vld [vmem:[%s1 + $0x10] sm:$0xff]
  %v14 = vld [vmem:[%s1 + $0x18] sm:$0xff]
  %v15 = vld [vmem:[%s1 + $0x20] sm:$0xff]
  %v16 = vld [vmem:[%s1 + $0x28] sm:$0x1]
  %v17 = vld [vmem:[%s0] sm:$0xff]
  %v18 = vld [vmem:[%s0 + $0x8] sm:$0xff]
  %v19 = vlaneseq
  %v20 = vshrl.u32 %v19, 7
  %v21 = vsub.s32 0, %v20
  %v22 = vrot.slane %v16, %v21
  %v25 = vrot.slane %v18, 7
  %vm26 = vcmask 1041409
  %v27 = vsel %vm26, %v25, %v17
  %vm28 = vcmask 64512
  %v29 = vsel %vm28, %v27, 0
  %31 = vmatprep.subr.mxu0 0.0
  %32 = vmatpush1.msra.mxu0 %v11
  %33 = vmatprep.subr.mxu0 0.0
  %34 = vmatpush1.msra.mxu0 0.0
  %35 = vmatprep.subr.mxu0 0.0
  %36 = vmatpush1.msra.mxu0 0.0
  %37 = vmatprep.subr.mxu0 0.0
  %38 = vmatpush1.msra.mxu0 0.0
  %39 = vmatprep.subr.mxu0 0.0
  %40 = vmatpush1.msra.mxu0 0.0
  %41 = vmatprep.subr.mxu0 0.0
  %42 = vmatpush1.msra.mxu0 0.0
  %43 = vmatprep.subr.mxu0 0.0
  %44 = vmatpush1.msra.mxu0 0.0
  %45 = vmatprep.subr.mxu0 0.0
  %46 = vmatpush1.msra.mxu0 0.0
  %47 = vmatprep.subr.mxu0 0.0
  %48 = vmatpush1.msra.mxu0 0.0
  %49 = vmatprep.subr.mxu0 0.0
  %50 = vmatpush1.msra.mxu0 0.0
  %51 = vmatprep.subr.mxu0 0.0
  %52 = vmatpush1.msra.mxu0 0.0
  %53 = vmatprep.subr.mxu0 0.0
  %54 = vmatpush1.msra.mxu0 0.0
  %55 = vmatprep.subr.mxu0 0.0
  %56 = vmatpush1.msra.mxu0 0.0
  %57 = vmatprep.subr.mxu0 0.0
  %58 = vmatpush1.msra.mxu0 0.0
  %59 = vmatprep.subr.mxu0 0.0
  %60 = vmatpush1.msra.mxu0 0.0
  %61 = vmatprep.subr.mxu0 0.0
  %62 = vmatpush1.msra.mxu0 0.0
  %63 = vmatprep.subr.mxu0 0.0
  %64 = vmatpush1.msra.mxu0 0.0
  %65 = vmatprep.subr.mxu0 0.0
  %66 = vmatpush1.msra.mxu0 0.0
  %67 = vmatprep.subr.mxu0 0.0
  %68 = vmatpush1.msra.mxu0 0.0
  %69 = vmatprep.subr.mxu0 0.0
  %70 = vmatpush1.msra.mxu0 0.0
  %71 = vmatprep.subr.mxu0 0.0
  %72 = vmatpush1.msra.mxu0 0.0
  %73 = vmatprep.subr.mxu0 0.0
  %74 = vmatpush1.msra.mxu0 0.0
  %75 = vmatprep.subr.mxu0 0.0
  %76 = vmatpush1.msra.mxu0 0.0
  %77 = vmatprep.subr.mxu0 0.0
  %78 = vmatpush1.msra.mxu0 0.0
  %79 = vmatprep.subr.mxu0 0.0
  %80 = vmatpush1.msra.mxu0 0.0
  %81 = vmatprep.subr.mxu0 0.0
  %82 = vmatpush1.msra.mxu0 0.0
  %83 = vmatprep.subr.mxu0 0.0
  %84 = vmatpush1.msra.mxu0 0.0
  %85 = vmatprep.subr.mxu0 0.0
  %86 = vmatpush1.msra.mxu0 0.0
  %87 = vmatprep.subr.mxu0 0.0
  %88 = vmatpush1.msra.mxu0 0.0
  %89 = vmatprep.subr.mxu0 0.0
  %90 = vmatpush1.msra.mxu0 0.0
  %91 = vmatprep.subr.mxu0 0.0
  %92 = vmatpush1.msra.mxu0 0.0
  %93 = vmatprep.subr.mxu0 0.0
  %94 = vmatpush1.msra.mxu0 0.0
  %95 = vmatprep.mubr.f32.mxu0 0.0
  %96 = vmatmul.mubr.f32.gmra.mrb[0].mxu0 %v29
  %v97 = vpop.f32.mrb[0].mxu0
  %v98 = vadd.f32 %v22, %v97
  %v99 = vpop.f32.mrb[0].mxu0
  %100 = vdwg.mxu0
  %v101 = vrot.slane %v17, 1
  %v102 = vsel %vm26, %v18, %v101
  %v103 = vsel %vm28, %v102, 0
  %105 = vmatprep.subr.mxu0 0.0
  %106 = vmatpush1.msra.mxu0 %v11
  %107 = vmatprep.subr.mxu0 0.0
  %108 = vmatpush1.msra.mxu0 0.0
  %109 = vmatprep.subr.mxu0 0.0
  %110 = vmatpush1.msra.mxu0 0.0
  %111 = vmatprep.subr.mxu0 0.0
  %112 = vmatpush1.msra.mxu0 0.0
  %113 = vmatprep.subr.mxu0 0.0
  %114 = vmatpush1.msra.mxu0 0.0
  %115 = vmatprep.subr.mxu0 0.0
  %116 = vmatpush1.msra.mxu0 0.0
  %117 = vmatprep.subr.mxu0 0.0
  %118 = vmatpush1.msra.mxu0 0.0
  %119 = vmatprep.subr.mxu0 0.0
  %120 = vmatpush1.msra.mxu0 0.0
  %121 = vmatprep.subr.mxu0 0.0
  %122 = vmatpush1.msra.mxu0 0.0
  %123 = vmatprep.subr.mxu0 0.0
  %124 = vmatpush1.msra.mxu0 0.0
  %125 = vmatprep.subr.mxu0 0.0
  %126 = vmatpush1.msra.mxu0 0.0
  %127 = vmatprep.subr.mxu0 0.0
  %128 = vmatpush1.msra.mxu0 0.0
  %129 = vmatprep.subr.mxu0 0.0
  %130 = vmatpush1.msra.mxu0 0.0
  %131 = vmatprep.subr.mxu0 0.0
  %132 = vmatpush1.msra.mxu0 0.0
  %133 = vmatprep.subr.mxu0 0.0
  %134 = vmatpush1.msra.mxu0 0.0
  %135 = vmatprep.subr.mxu0 0.0
  %136 = vmatpush1.msra.mxu0 0.0
  %137 = vmatprep.subr.mxu0 0.0
  %138 = vmatpush1.msra.mxu0 0.0
  %139 = vmatprep.subr.mxu0 0.0
  %140 = vmatpush1.msra.mxu0 0.0
  %141 = vmatprep.subr.mxu0 0.0
  %142 = vmatpush1.msra.mxu0 0.0
  %143 = vmatprep.subr.mxu0 0.0
  %144 = vmatpush1.msra.mxu0 0.0
  %145 = vmatprep.subr.mxu0 0.0
  %146 = vmatpush1.msra.mxu0 0.0
  %147 = vmatprep.subr.mxu0 0.0
  %148 = vmatpush1.msra.mxu0 0.0
  %149 = vmatprep.subr.mxu0 0.0
  %150 = vmatpush1.msra.mxu0 0.0
  %151 = vmatprep.subr.mxu0 0.0
  %152 = vmatpush1.msra.mxu0 0.0
  %153 = vmatprep.subr.mxu0 0.0
  %154 = vmatpush1.msra.mxu0 0.0
  %155 = vmatprep.subr.mxu0 0.0
  %156 = vmatpush1.msra.mxu0 0.0
  %157 = vmatprep.subr.mxu0 0.0
  %158 = vmatpush1.msra.mxu0 0.0
  %159 = vmatprep.subr.mxu0 0.0
  %160 = vmatpush1.msra.mxu0 0.0
  %161 = vmatprep.subr.mxu0 0.0
  %162 = vmatpush1.msra.mxu0 0.0
  %163 = vmatprep.subr.mxu0 0.0
  %164 = vmatpush1.msra.mxu0 0.0
  %165 = vmatprep.subr.mxu0 0.0
  %166 = vmatpush1.msra.mxu0 0.0
  %167 = vmatprep.subr.mxu0 0.0
  %168 = vmatpush1.msra.mxu0 0.0
  %169 = vmatprep.mubr.f32.mxu0 0.0
  %170 = vmatmul.mubr.f32.gmra.mrb[0].mxu0 %v103
  %v171 = vpop.f32.mrb[0].mxu0
  %v172 = vadd.f32 %v22, %v171
  %v173 = vpop.f32.mrb[0].mxu0
  %174 = vdwg.mxu0
  %v175 = vrot.slane %v17, 2
  %v176 = vrot.slane %v18, 1
  %v177 = vsel %vm26, %v176, %v175
  %v178 = vsel %vm28, %v177, 0
  %180 = vmatprep.subr.mxu0 0.0
  %181 = vmatpush1.msra.mxu0 %v11
  %182 = vmatprep.subr.mxu0 0.0
  %183 = vmatpush1.msra.mxu0 0.0
  %184 = vmatprep.subr.mxu0 0.0
  %185 = vmatpush1.msra.mxu0 0.0
  %186 = vmatprep.subr.mxu0 0.0
  %187 = vmatpush1.msra.mxu0 0.0
  %188 = vmatprep.subr.mxu0 0.0
  %189 = vmatpush1.msra.mxu0 0.0
  %190 = vmatprep.subr.mxu0 0.0
  %191 = vmatpush1.msra.mxu0 0.0
  %192 = vmatprep.subr.mxu0 0.0
  %193 = vmatpush1.msra.mxu0 0.0
  %194 = vmatprep.subr.mxu0 0.0
  %195 = vmatpush1.msra.mxu0 0.0
  %196 = vmatprep.subr.mxu0 0.0
  %197 = vmatpush1.msra.mxu0 0.0
  %198 = vmatprep.subr.mxu0 0.0
  %199 = vmatpush1.msra.mxu0 0.0
  %200 = vmatprep.subr.mxu0 0.0
  %201 = vmatpush1.msra.mxu0 0.0
  %202 = vmatprep.subr.mxu0 0.0
  %203 = vmatpush1.msra.mxu0 0.0
  %204 = vmatprep.subr.mxu0 0.0
  %205 = vmatpush1.msra.mxu0 0.0
  %206 = vmatprep.subr.mxu0 0.0
  %207 = vmatpush1.msra.mxu0 0.0
  %208 = vmatprep.subr.mxu0 0.0
  %209 = vmatpush1.msra.mxu0 0.0
  %210 = vmatprep.subr.mxu0 0.0
  %211 = vmatpush1.msra.mxu0 0.0
  %212 = vmatprep.subr.mxu0 0.0
  %213 = vmatpush1.msra.mxu0 0.0
  %214 = vmatprep.subr.mxu0 0.0
  %215 = vmatpush1.msra.mxu0 0.0
  %216 = vmatprep.subr.mxu0 0.0
  %217 = vmatpush1.msra.mxu0 0.0
  %218 = vmatprep.subr.mxu0 0.0
  %219 = vmatpush1.msra.mxu0 0.0
  %220 = vmatprep.subr.mxu0 0.0
  %221 = vmatpush1.msra.mxu0 0.0
  %222 = vmatprep.subr.mxu0 0.0
  %223 = vmatpush1.msra.mxu0 0.0
  %224 = vmatprep.subr.mxu0 0.0
  %225 = vmatpush1.msra.mxu0 0.0
  %226 = vmatprep.subr.mxu0 0.0
  %227 = vmatpush1.msra.mxu0 0.0
  %228 = vmatprep.subr.mxu0 0.0
  %229 = vmatpush1.msra.mxu0 0.0
  %230 = vmatprep.subr.mxu0 0.0
  %231 = vmatpush1.msra.mxu0 0.0
  %232 = vmatprep.subr.mxu0 0.0
  %233 = vmatpush1.msra.mxu0 0.0
  %234 = vmatprep.subr.mxu0 0.0
  %235 = vmatpush1.msra.mxu0 0.0
  %236 = vmatprep.subr.mxu0 0.0
  %237 = vmatpush1.msra.mxu0 0.0
  %238 = vmatprep.subr.mxu0 0.0
  %239 = vmatpush1.msra.mxu0 0.0
  %240 = vmatprep.subr.mxu0 0.0
  %241 = vmatpush1.msra.mxu0 0.0
  %242 = vmatprep.subr.mxu0 0.0
  %243 = vmatpush1.msra.mxu0 0.0
  %244 = vmatprep.mubr.f32.mxu0 0.0
  %245 = vmatmul.mubr.f32.gmra.mrb[0].mxu0 %v178
  %v246 = vpop.f32.mrb[0].mxu0
  %v247 = vadd.f32 %v22, %v246
  %v248 = vpop.f32.mrb[0].mxu0
  %249 = vdwg.mxu0
  %v250 = vrot.slane %v17, 3
  %v251 = vrot.slane %v18, 2
  %v252 = vsel %vm26, %v251, %v250
  %v253 = vsel %vm28, %v252, 0
  %255 = vmatprep.subr.mxu0 0.0
  %256 = vmatpush1.msra.mxu0 %v11
  %257 = vmatprep.subr.mxu0 0.0
  %258 = vmatpush1.msra.mxu0 0.0
  %259 = vmatprep.subr.mxu0 0.0
  %260 = vmatpush1.msra.mxu0 0.0
  %261 = vmatprep.subr.mxu0 0.0
  %262 = vmatpush1.msra.mxu0 0.0
  %263 = vmatprep.subr.mxu0 0.0
  %264 = vmatpush1.msra.mxu0 0.0
  %265 = vmatprep.subr.mxu0 0.0
  %266 = vmatpush1.msra.mxu0 0.0
  %267 = vmatprep.subr.mxu0 0.0
  %268 = vmatpush1.msra.mxu0 0.0
  %269 = vmatprep.subr.mxu0 0.0
  %270 = vmatpush1.msra.mxu0 0.0
  %271 = vmatprep.subr.mxu0 0.0
  %272 = vmatpush1.msra.mxu0 0.0
  %273 = vmatprep.subr.mxu0 0.0
  %274 = vmatpush1.msra.mxu0 0.0
  %275 = vmatprep.subr.mxu0 0.0
  %276 = vmatpush1.msra.mxu0 0.0
  %277 = vmatprep.subr.mxu0 0.0
  %278 = vmatpush1.msra.mxu0 0.0
  %279 = vmatprep.subr.mxu0 0.0
  %280 = vmatpush1.msra.mxu0 0.0
  %281 = vmatprep.subr.mxu0 0.0
  %282 = vmatpush1.msra.mxu0 0.0
  %283 = vmatprep.subr.mxu0 0.0
  %284 = vmatpush1.msra.mxu0 0.0
  %285 = vmatprep.subr.mxu0 0.0
  %286 = vmatpush1.msra.mxu0 0.0
  %287 = vmatprep.subr.mxu0 0.0
  %288 = vmatpush1.msra.mxu0 0.0
  %289 = vmatprep.subr.mxu0 0.0
  %290 = vmatpush1.msra.mxu0 0.0
  %291 = vmatprep.subr.mxu0 0.0
  %292 = vmatpush1.msra.mxu0 0.0
  %293 = vmatprep.subr.mxu0 0.0
  %294 = vmatpush1.msra.mxu0 0.0
  %295 = vmatprep.subr.mxu0 0.0
  %296 = vmatpush1.msra.mxu0 0.0
  %297 = vmatprep.subr.mxu0 0.0
  %298 = vmatpush1.msra.mxu0 0.0
  %299 = vmatprep.subr.mxu0 0.0
  %300 = vmatpush1.msra.mxu0 0.0
  %301 = vmatprep.subr.mxu0 0.0
  %302 = vmatpush1.msra.mxu0 0.0
  %303 = vmatprep.subr.mxu0 0.0
  %304 = vmatpush1.msra.mxu0 0.0
  %305 = vmatprep.subr.mxu0 0.0
  %306 = vmatpush1.msra.mxu0 0.0
  %307 = vmatprep.subr.mxu0 0.0
  %308 = vmatpush1.msra.mxu0 0.0
  %309 = vmatprep.subr.mxu0 0.0
  %310 = vmatpush1.msra.mxu0 0.0
  %311 = vmatprep.subr.mxu0 0.0
  %312 = vmatpush1.msra.mxu0 0.0
  %313 = vmatprep.subr.mxu0 0.0
  %314 = vmatpush1.msra.mxu0 0.0
  %315 = vmatprep.subr.mxu0 0.0
  %316 = vmatpush1.msra.mxu0 0.0
  %317 = vmatprep.subr.mxu0 0.0
  %318 = vmatpush1.msra.mxu0 0.0
  %319 = vmatprep.mubr.f32.mxu0 0.0
  %320 = vmatmul.mubr.f32.gmra.mrb[0].mxu0 %v253
  %v321 = vpop.f32.mrb[0].mxu0
  %v322 = vadd.f32 %v22, %v321
  %v323 = vpop.f32.mrb[0].mxu0
  %324 = vdwg.mxu0
  %v325 = vrot.slane %v17, 4
  %v326 = vrot.slane %v18, 3
  %v327 = vsel %vm26, %v326, %v325
  %v328 = vsel %vm28, %v327, 0
  %330 = vmatprep.subr.mxu0 0.0
  %331 = vmatpush1.msra.mxu0 %v11
  %332 = vmatprep.subr.mxu0 0.0
  %333 = vmatpush1.msra.mxu0 0.0
  %334 = vmatprep.subr.mxu0 0.0
  %335 = vmatpush1.msra.mxu0 0.0
  %336 = vmatprep.subr.mxu0 0.0
  %337 = vmatpush1.msra.mxu0 0.0
  %338 = vmatprep.subr.mxu0 0.0
  %339 = vmatpush1.msra.mxu0 0.0
  %340 = vmatprep.subr.mxu0 0.0
  %341 = vmatpush1.msra.mxu0 0.0
  %342 = vmatprep.subr.mxu0 0.0
  %343 = vmatpush1.msra.mxu0 0.0
  %344 = vmatprep.subr.mxu0 0.0
  %345 = vmatpush1.msra.mxu0 0.0
  %346 = vmatprep.subr.mxu0 0.0
  %347 = vmatpush1.msra.mxu0 0.0
  %348 = vmatprep.subr.mxu0 0.0
  %349 = vmatpush1.msra.mxu0 0.0
  %350 = vmatprep.subr.mxu0 0.0
  %351 = vmatpush1.msra.mxu0 0.0
  %352 = vmatprep.subr.mxu0 0.0
  %353 = vmatpush1.msra.mxu0 0.0
  %354 = vmatprep.subr.mxu0 0.0
  %355 = vmatpush1.msra.mxu0 0.0
  %356 = vmatprep.subr.mxu0 0.0
  %357 = vmatpush1.msra.mxu0 0.0
  %358 = vmatprep.subr.mxu0 0.0
  %359 = vmatpush1.msra.mxu0 0.0
  %360 = vmatprep.subr.mxu0 0.0
  %361 = vmatpush1.msra.mxu0 0.0
  %362 = vmatprep.subr.mxu0 0.0
  %363 = vmatpush1.msra.mxu0 0.0
  %364 = vmatprep.subr.mxu0 0.0
  %365 = vmatpush1.msra.mxu0 0.0
  %366 = vmatprep.subr.mxu0 0.0
  %367 = vmatpush1.msra.mxu0 0.0
  %368 = vmatprep.subr.mxu0 0.0
  %369 = vmatpush1.msra.mxu0 0.0
  %370 = vmatprep.subr.mxu0 0.0
  %371 = vmatpush1.msra.mxu0 0.0
  %372 = vmatprep.subr.mxu0 0.0
  %373 = vmatpush1.msra.mxu0 0.0
  %374 = vmatprep.subr.mxu0 0.0
  %375 = vmatpush1.msra.mxu0 0.0
  %376 = vmatprep.subr.mxu0 0.0
  %377 = vmatpush1.msra.mxu0 0.0
  %378 = vmatprep.subr.mxu0 0.0
  %379 = vmatpush1.msra.mxu0 0.0
  %380 = vmatprep.subr.mxu0 0.0
  %381 = vmatpush1.msra.mxu0 0.0
  %382 = vmatprep.subr.mxu0 0.0
  %383 = vmatpush1.msra.mxu0 0.0
  %384 = vmatprep.subr.mxu0 0.0
  %385 = vmatpush1.msra.mxu0 0.0
  %386 = vmatprep.subr.mxu0 0.0
  %387 = vmatpush1.msra.mxu0 0.0
  %388 = vmatprep.subr.mxu0 0.0
  %389 = vmatpush1.msra.mxu0 0.0
  %390 = vmatprep.subr.mxu0 0.0
  %391 = vmatpush1.msra.mxu0 0.0
  %392 = vmatprep.subr.mxu0 0.0
  %393 = vmatpush1.msra.mxu0 0.0
  %394 = vmatprep.mubr.f32.mxu0 0.0
  %395 = vmatmul.mubr.f32.gmra.mrb[0].mxu0 %v328
  %v396 = vpop.f32.mrb[0].mxu0
  %v397 = vadd.f32 %v22, %v396
  %v398 = vpop.f32.mrb[0].mxu0
  %399 = vdwg.mxu0
  %v400 = vrot.slane %v17, 5
  %v401 = vrot.slane %v18, 4
  %v402 = vsel %vm26, %v401, %v400
  %v403 = vsel %vm28, %v402, 0
  %405 = vmatprep.subr.mxu0 0.0
  %406 = vmatpush1.msra.mxu0 %v11
  %407 = vmatprep.subr.mxu0 0.0
  %408 = vmatpush1.msra.mxu0 0.0
  %409 = vmatprep.subr.mxu0 0.0
  %410 = vmatpush1.msra.mxu0 0.0
  %411 = vmatprep.subr.mxu0 0.0
  %412 = vmatpush1.msra.mxu0 0.0
  %413 = vmatprep.subr.mxu0 0.0
  %414 = vmatpush1.msra.mxu0 0.0
  %415 = vmatprep.subr.mxu0 0.0
  %416 = vmatpush1.msra.mxu0 0.0
  %417 = vmatprep.subr.mxu0 0.0
  %418 = vmatpush1.msra.mxu0 0.0
  %419 = vmatprep.subr.mxu0 0.0
  %420 = vmatpush1.msra.mxu0 0.0
  %421 = vmatprep.subr.mxu0 0.0
  %422 = vmatpush1.msra.mxu0 0.0
  %423 = vmatprep.subr.mxu0 0.0
  %424 = vmatpush1.msra.mxu0 0.0
  %425 = vmatprep.subr.mxu0 0.0
  %426 = vmatpush1.msra.mxu0 0.0
  %427 = vmatprep.subr.mxu0 0.0
  %428 = vmatpush1.msra.mxu0 0.0
  %429 = vmatprep.subr.mxu0 0.0
  %430 = vmatpush1.msra.mxu0 0.0
  %431 = vmatprep.subr.mxu0 0.0
  %432 = vmatpush1.msra.mxu0 0.0
  %433 = vmatprep.subr.mxu0 0.0
  %434 = vmatpush1.msra.mxu0 0.0
  %435 = vmatprep.subr.mxu0 0.0
  %436 = vmatpush1.msra.mxu0 0.0
  %437 = vmatprep.subr.mxu0 0.0
  %438 = vmatpush1.msra.mxu0 0.0
  %439 = vmatprep.subr.mxu0 0.0
  %440 = vmatpush1.msra.mxu0 0.0
  %441 = vmatprep.subr.mxu0 0.0
  %442 = vmatpush1.msra.mxu0 0.0
  %443 = vmatprep.subr.mxu0 0.0
  %444 = vmatpush1.msra.mxu0 0.0
  %445 = vmatprep.subr.mxu0 0.0
  %446 = vmatpush1.msra.mxu0 0.0
  %447 = vmatprep.subr.mxu0 0.0
  %448 = vmatpush1.msra.mxu0 0.0
  %449 = vmatprep.subr.mxu0 0.0
  %450 = vmatpush1.msra.mxu0 0.0
  %451 = vmatprep.subr.mxu0 0.0
  %452 = vmatpush1.msra.mxu0 0.0
  %453 = vmatprep.subr.mxu0 0.0
  %454 = vmatpush1.msra.mxu0 0.0
  %455 = vmatprep.subr.mxu0 0.0
  %456 = vmatpush1.msra.mxu0 0.0
  %457 = vmatprep.subr.mxu0 0.0
  %458 = vmatpush1.msra.mxu0 0.0
  %459 = vmatprep.subr.mxu0 0.0
  %460 = vmatpush1.msra.mxu0 0.0
  %461 = vmatprep.subr.mxu0 0.0
  %462 = vmatpush1.msra.mxu0 0.0
  %463 = vmatprep.subr.mxu0 0.0
  %464 = vmatpush1.msra.mxu0 0.0
  %465 = vmatprep.subr.mxu0 0.0
  %466 = vmatpush1.msra.mxu0 0.0
  %467 = vmatprep.subr.mxu0 0.0
  %468 = vmatpush1.msra.mxu0 0.0
  %469 = vmatprep.mubr.f32.mxu0 0.0
  %470 = vmatmul.mubr.f32.gmra.mrb[0].mxu0 %v403
  %v471 = vpop.f32.mrb[0].mxu0
  %v472 = vadd.f32 %v22, %v471
  %v473 = vpop.f32.mrb[0].mxu0
  %474 = vdwg.mxu0
  %v475 = vrot.slane %v17, 6
  %v476 = vrot.slane %v18, 5
  %v477 = vsel %vm26, %v476, %v475
  %v478 = vsel %vm28, %v477, 0
  %480 = vmatprep.subr.mxu0 0.0
  %481 = vmatpush1.msra.mxu0 %v11
  %482 = vmatprep.subr.mxu0 0.0
  %483 = vmatpush1.msra.mxu0 0.0
  %484 = vmatprep.subr.mxu0 0.0
  %485 = vmatpush1.msra.mxu0 0.0
  %486 = vmatprep.subr.mxu0 0.0
  %487 = vmatpush1.msra.mxu0 0.0
  %488 = vmatprep.subr.mxu0 0.0
  %489 = vmatpush1.msra.mxu0 0.0
  %490 = vmatprep.subr.mxu0 0.0
  %491 = vmatpush1.msra.mxu0 0.0
  %492 = vmatprep.subr.mxu0 0.0
  %493 = vmatpush1.msra.mxu0 0.0
  %494 = vmatprep.subr.mxu0 0.0
  %495 = vmatpush1.msra.mxu0 0.0
  %496 = vmatprep.subr.mxu0 0.0
  %497 = vmatpush1.msra.mxu0 0.0
  %498 = vmatprep.subr.mxu0 0.0
  %499 = vmatpush1.msra.mxu0 0.0
  %500 = vmatprep.subr.mxu0 0.0
  %501 = vmatpush1.msra.mxu0 0.0
  %502 = vmatprep.subr.mxu0 0.0
  %503 = vmatpush1.msra.mxu0 0.0
  %504 = vmatprep.subr.mxu0 0.0
  %505 = vmatpush1.msra.mxu0 0.0
  %506 = vmatprep.subr.mxu0 0.0
  %507 = vmatpush1.msra.mxu0 0.0
  %508 = vmatprep.subr.mxu0 0.0
  %509 = vmatpush1.msra.mxu0 0.0
  %510 = vmatprep.subr.mxu0 0.0
  %511 = vmatpush1.msra.mxu0 0.0
  %512 = vmatprep.subr.mxu0 0.0
  %513 = vmatpush1.msra.mxu0 0.0
  %514 = vmatprep.subr.mxu0 0.0
  %515 = vmatpush1.msra.mxu0 0.0
  %516 = vmatprep.subr.mxu0 0.0
  %517 = vmatpush1.msra.mxu0 0.0
  %518 = vmatprep.subr.mxu0 0.0
  %519 = vmatpush1.msra.mxu0 0.0
  %520 = vmatprep.subr.mxu0 0.0
  %521 = vmatpush1.msra.mxu0 0.0
  %522 = vmatprep.subr.mxu0 0.0
  %523 = vmatpush1.msra.mxu0 0.0
  %524 = vmatprep.subr.mxu0 0.0
  %525 = vmatpush1.msra.mxu0 0.0
  %526 = vmatprep.subr.mxu0 0.0
  %527 = vmatpush1.msra.mxu0 0.0
  %528 = vmatprep.subr.mxu0 0.0
  %529 = vmatpush1.msra.mxu0 0.0
  %530 = vmatprep.subr.mxu0 0.0
  %531 = vmatpush1.msra.mxu0 0.0
  %532 = vmatprep.subr.mxu0 0.0
  %533 = vmatpush1.msra.mxu0 0.0
  %534 = vmatprep.subr.mxu0 0.0
  %535 = vmatpush1.msra.mxu0 0.0
  %536 = vmatprep.subr.mxu0 0.0
  %537 = vmatpush1.msra.mxu0 0.0
  %538 = vmatprep.subr.mxu0 0.0
  %539 = vmatpush1.msra.mxu0 0.0
  %540 = vmatprep.subr.mxu0 0.0
  %541 = vmatpush1.msra.mxu0 0.0
  %542 = vmatprep.subr.mxu0 0.0
  %543 = vmatpush1.msra.mxu0 0.0
  %544 = vmatprep.mubr.f32.mxu0 0.0
  %545 = vmatmul.mubr.f32.gmra.mrb[0].mxu0 %v478
  %v546 = vpop.f32.mrb[0].mxu0
  %v547 = vadd.f32 %v22, %v546
  %v548 = vpop.f32.mrb[0].mxu0
  %549 = vdwg.mxu0
  %v550 = vrot.slane %v17, 7
  %v551 = vrot.slane %v18, 6
  %v552 = vsel %vm26, %v551, %v550
  %v553 = vsel %vm28, %v552, 0
  %555 = vmatprep.subr.mxu0 0.0
  %556 = vmatpush1.msra.mxu0 %v11
  %557 = vmatprep.subr.mxu0 0.0
  %558 = vmatpush1.msra.mxu0 0.0
  %559 = vmatprep.subr.mxu0 0.0
  %560 = vmatpush1.msra.mxu0 0.0
  %561 = vmatprep.subr.mxu0 0.0
  %562 = vmatpush1.msra.mxu0 0.0
  %563 = vmatprep.subr.mxu0 0.0
  %564 = vmatpush1.msra.mxu0 0.0
  %565 = vmatprep.subr.mxu0 0.0
  %566 = vmatpush1.msra.mxu0 0.0
  %567 = vmatprep.subr.mxu0 0.0
  %568 = vmatpush1.msra.mxu0 0.0
  %569 = vmatprep.subr.mxu0 0.0
  %570 = vmatpush1.msra.mxu0 0.0
  %571 = vmatprep.subr.mxu0 0.0
  %572 = vmatpush1.msra.mxu0 0.0
  %573 = vmatprep.subr.mxu0 0.0
  %574 = vmatpush1.msra.mxu0 0.0
  %575 = vmatprep.subr.mxu0 0.0
  %576 = vmatpush1.msra.mxu0 0.0
  %577 = vmatprep.subr.mxu0 0.0
  %578 = vmatpush1.msra.mxu0 0.0
  %579 = vmatprep.subr.mxu0 0.0
  %580 = vmatpush1.msra.mxu0 0.0
  %581 = vmatprep.subr.mxu0 0.0
  %582 = vmatpush1.msra.mxu0 0.0
  %583 = vmatprep.subr.mxu0 0.0
  %584 = vmatpush1.msra.mxu0 0.0
  %585 = vmatprep.subr.mxu0 0.0
  %586 = vmatpush1.msra.mxu0 0.0
  %587 = vmatprep.subr.mxu0 0.0
  %588 = vmatpush1.msra.mxu0 0.0
  %589 = vmatprep.subr.mxu0 0.0
  %590 = vmatpush1.msra.mxu0 0.0
  %591 = vmatprep.subr.mxu0 0.0
  %592 = vmatpush1.msra.mxu0 0.0
  %593 = vmatprep.subr.mxu0 0.0
  %594 = vmatpush1.msra.mxu0 0.0
  %595 = vmatprep.subr.mxu0 0.0
  %596 = vmatpush1.msra.mxu0 0.0
  %597 = vmatprep.subr.mxu0 0.0
  %598 = vmatpush1.msra.mxu0 0.0
  %599 = vmatprep.subr.mxu0 0.0
  %600 = vmatpush1.msra.mxu0 0.0
  %601 = vmatprep.subr.mxu0 0.0
  %602 = vmatpush1.msra.mxu0 0.0
  %603 = vmatprep.subr.mxu0 0.0
  %604 = vmatpush1.msra.mxu0 0.0
  %605 = vmatprep.subr.mxu0 0.0
  %606 = vmatpush1.msra.mxu0 0.0
  %607 = vmatprep.subr.mxu0 0.0
  %608 = vmatpush1.msra.mxu0 0.0
  %609 = vmatprep.subr.mxu0 0.0
  %610 = vmatpush1.msra.mxu0 0.0
  %611 = vmatprep.subr.mxu0 0.0
  %612 = vmatpush1.msra.mxu0 0.0
  %613 = vmatprep.subr.mxu0 0.0
  %614 = vmatpush1.msra.mxu0 0.0
  %615 = vmatprep.subr.mxu0 0.0
  %616 = vmatpush1.msra.mxu0 0.0
  %617 = vmatprep.subr.mxu0 0.0
  %618 = vmatpush1.msra.mxu0 0.0
  %619 = vmatprep.mubr.f32.mxu0 0.0
  %620 = vmatmul.mubr.f32.gmra.mrb[0].mxu0 %v553
  %v621 = vpop.f32.mrb[0].mxu0
  %v622 = vadd.f32 %v22, %v621
  %v623 = vpop.f32.mrb[0].mxu0
  %624 = vdwg.mxu0
  %vm625 = vcmask 261120
  %v627 = vsel %vm625, 0.0, 0
  %629 = vmatprep.subr.mxu0 0.0
  %630 = vmatpush1.msra.mxu0 %v12
  %631 = vmatprep.subr.mxu0 0.0
  %632 = vmatpush1.msra.mxu0 %v13
  %633 = vmatprep.subr.mxu0 0.0
  %634 = vmatpush1.msra.mxu0 %v14
  %635 = vmatprep.subr.mxu0 0.0
  %636 = vmatpush1.msra.mxu0 %v15
  %637 = vmatprep.subr.mxu0 0.0
  %638 = vmatpush1.msra.mxu0 0.0
  %639 = vmatprep.subr.mxu0 0.0
  %640 = vmatpush1.msra.mxu0 0.0
  %641 = vmatprep.subr.mxu0 0.0
  %642 = vmatpush1.msra.mxu0 0.0
  %643 = vmatprep.subr.mxu0 0.0
  %644 = vmatpush1.msra.mxu0 0.0
  %645 = vmatprep.subr.mxu0 0.0
  %646 = vmatpush1.msra.mxu0 0.0
  %647 = vmatprep.subr.mxu0 0.0
  %648 = vmatpush1.msra.mxu0 0.0
  %649 = vmatprep.subr.mxu0 0.0
  %650 = vmatpush1.msra.mxu0 0.0
  %651 = vmatprep.subr.mxu0 0.0
  %652 = vmatpush1.msra.mxu0 0.0
  %653 = vmatprep.subr.mxu0 0.0
  %654 = vmatpush1.msra.mxu0 0.0
  %655 = vmatprep.subr.mxu0 0.0
  %656 = vmatpush1.msra.mxu0 0.0
  %657 = vmatprep.subr.mxu0 0.0
  %658 = vmatpush1.msra.mxu0 0.0
  %659 = vmatprep.subr.mxu0 0.0
  %660 = vmatpush1.msra.mxu0 0.0
  %661 = vmatprep.subr.mxu0 0.0
  %662 = vmatpush1.msra.mxu0 0.0
  %663 = vmatprep.subr.mxu0 0.0
  %664 = vmatpush1.msra.mxu0 0.0
  %665 = vmatprep.subr.mxu0 0.0
  %666 = vmatpush1.msra.mxu0 0.0
  %667 = vmatprep.subr.mxu0 0.0
  %668 = vmatpush1.msra.mxu0 0.0
  %669 = vmatprep.subr.mxu0 0.0
  %670 = vmatpush1.msra.mxu0 0.0
  %671 = vmatprep.subr.mxu0 0.0
  %672 = vmatpush1.msra.mxu0 0.0
  %673 = vmatprep.subr.mxu0 0.0
  %674 = vmatpush1.msra.mxu0 0.0
  %675 = vmatprep.subr.mxu0 0.0
  %676 = vmatpush1.msra.mxu0 0.0
  %677 = vmatprep.subr.mxu0 0.0
  %678 = vmatpush1.msra.mxu0 0.0
  %679 = vmatprep.subr.mxu0 0.0
  %680 = vmatpush1.msra.mxu0 0.0
  %681 = vmatprep.subr.mxu0 0.0
  %682 = vmatpush1.msra.mxu0 0.0
  %683 = vmatprep.subr.mxu0 0.0
  %684 = vmatpush1.msra.mxu0 0.0
  %685 = vmatprep.subr.mxu0 0.0
  %686 = vmatpush1.msra.mxu0 0.0
  %687 = vmatprep.subr.mxu0 0.0
  %688 = vmatpush1.msra.mxu0 0.0
  %689 = vmatprep.subr.mxu0 0.0
  %690 = vmatpush1.msra.mxu0 0.0
  %691 = vmatprep.subr.mxu0 0.0
  %692 = vmatpush1.msra.mxu0 0.0
  %693 = vmatprep.mubr.f32.mxu0 0.0
  %694 = vmatmul.mubr.f32.gmra.mrb[0].mxu0 %v627
  %v695 = vpop.f32.mrb[0].mxu0
  %v696 = vadd.f32 0.0, %v695
  %v697 = vpop.f32.mrb[0].mxu0
  %698 = vdwg.mxu0
  %v699 = vadd.f32 %v98, %v696
  %v700 = vtanh.pop %v699
  %v702 = vsel %vm625, %v700, 0
  %704 = vmatprep.subr.mxu0 0.0
  %705 = vmatpush1.msra.mxu0 %v12
  %706 = vmatprep.subr.mxu0 0.0
  %707 = vmatpush1.msra.mxu0 %v13
  %708 = vmatprep.subr.mxu0 0.0
  %709 = vmatpush1.msra.mxu0 %v14
  %710 = vmatprep.subr.mxu0 0.0
  %711 = vmatpush1.msra.mxu0 %v15
  %712 = vmatprep.subr.mxu0 0.0
  %713 = vmatpush1.msra.mxu0 0.0
  %714 = vmatprep.subr.mxu0 0.0
  %715 = vmatpush1.msra.mxu0 0.0
  %716 = vmatprep.subr.mxu0 0.0
  %717 = vmatpush1.msra.mxu0 0.0
  %718 = vmatprep.subr.mxu0 0.0
  %719 = vmatpush1.msra.mxu0 0.0
  %720 = vmatprep.subr.mxu0 0.0
  %721 = vmatpush1.msra.mxu0 0.0
  %722 = vmatprep.subr.mxu0 0.0
  %723 = vmatpush1.msra.mxu0 0.0
  %724 = vmatprep.subr.mxu0 0.0
  %725 = vmatpush1.msra.mxu0 0.0
  %726 = vmatprep.subr.mxu0 0.0
  %727 = vmatpush1.msra.mxu0 0.0
  %728 = vmatprep.subr.mxu0 0.0
  %729 = vmatpush1.msra.mxu0 0.0
  %730 = vmatprep.subr.mxu0 0.0
  %731 = vmatpush1.msra.mxu0 0.0
  %732 = vmatprep.subr.mxu0 0.0
  %733 = vmatpush1.msra.mxu0 0.0
  %734 = vmatprep.subr.mxu0 0.0
  %735 = vmatpush1.msra.mxu0 0.0
  %736 = vmatprep.subr.mxu0 0.0
  %737 = vmatpush1.msra.mxu0 0.0
  %738 = vmatprep.subr.mxu0 0.0
  %739 = vmatpush1.msra.mxu0 0.0
  %740 = vmatprep.subr.mxu0 0.0
  %741 = vmatpush1.msra.mxu0 0.0
  %742 = vmatprep.subr.mxu0 0.0
  %743 = vmatpush1.msra.mxu0 0.0
  %744 = vmatprep.subr.mxu0 0.0
  %745 = vmatpush1.msra.mxu0 0.0
  %746 = vmatprep.subr.mxu0 0.0
  %747 = vmatpush1.msra.mxu0 0.0
  %748 = vmatprep.subr.mxu0 0.0
  %749 = vmatpush1.msra.mxu0 0.0
  %750 = vmatprep.subr.mxu0 0.0
  %751 = vmatpush1.msra.mxu0 0.0
  %752 = vmatprep.subr.mxu0 0.0
  %753 = vmatpush1.msra.mxu0 0.0
  %754 = vmatprep.subr.mxu0 0.0
  %755 = vmatpush1.msra.mxu0 0.0
  %756 = vmatprep.subr.mxu0 0.0
  %757 = vmatpush1.msra.mxu0 0.0
  %758 = vmatprep.subr.mxu0 0.0
  %759 = vmatpush1.msra.mxu0 0.0
  %760 = vmatprep.subr.mxu0 0.0
  %761 = vmatpush1.msra.mxu0 0.0
  %762 = vmatprep.subr.mxu0 0.0
  %763 = vmatpush1.msra.mxu0 0.0
  %764 = vmatprep.subr.mxu0 0.0
  %765 = vmatpush1.msra.mxu0 0.0
  %766 = vmatprep.subr.mxu0 0.0
  %767 = vmatpush1.msra.mxu0 0.0
  %768 = vmatprep.mubr.f32.mxu0 0.0
  %769 = vmatmul.mubr.f32.gmra.mrb[0].mxu0 %v702
  %v770 = vpop.f32.mrb[0].mxu0
  %v771 = vadd.f32 0.0, %v770
  %v772 = vpop.f32.mrb[0].mxu0
  %773 = vdwg.mxu0
  %v774 = vadd.f32 %v172, %v771
  %v775 = vtanh.pop %v774
  %v777 = vsel %vm625, %v775, 0
  %779 = vmatprep.subr.mxu0 0.0
  %780 = vmatpush1.msra.mxu0 %v12
  %781 = vmatprep.subr.mxu0 0.0
  %782 = vmatpush1.msra.mxu0 %v13
  %783 = vmatprep.subr.mxu0 0.0
  %784 = vmatpush1.msra.mxu0 %v14
  %785 = vmatprep.subr.mxu0 0.0
  %786 = vmatpush1.msra.mxu0 %v15
  %787 = vmatprep.subr.mxu0 0.0
  %788 = vmatpush1.msra.mxu0 0.0
  %789 = vmatprep.subr.mxu0 0.0
  %790 = vmatpush1.msra.mxu0 0.0
  %791 = vmatprep.subr.mxu0 0.0
  %792 = vmatpush1.msra.mxu0 0.0
  %793 = vmatprep.subr.mxu0 0.0
  %794 = vmatpush1.msra.mxu0 0.0
  %795 = vmatprep.subr.mxu0 0.0
  %796 = vmatpush1.msra.mxu0 0.0
  %797 = vmatprep.subr.mxu0 0.0
  %798 = vmatpush1.msra.mxu0 0.0
  %799 = vmatprep.subr.mxu0 0.0
  %800 = vmatpush1.msra.mxu0 0.0
  %801 = vmatprep.subr.mxu0 0.0
  %802 = vmatpush1.msra.mxu0 0.0
  %803 = vmatprep.subr.mxu0 0.0
  %804 = vmatpush1.msra.mxu0 0.0
  %805 = vmatprep.subr.mxu0 0.0
  %806 = vmatpush1.msra.mxu0 0.0
  %807 = vmatprep.subr.mxu0 0.0
  %808 = vmatpush1.msra.mxu0 0.0
  %809 = vmatprep.subr.mxu0 0.0
  %810 = vmatpush1.msra.mxu0 0.0
  %811 = vmatprep.subr.mxu0 0.0
  %812 = vmatpush1.msra.mxu0 0.0
  %813 = vmatprep.subr.mxu0 0.0
  %814 = vmatpush1.msra.mxu0 0.0
  %815 = vmatprep.subr.mxu0 0.0
  %816 = vmatpush1.msra.mxu0 0.0
  %817 = vmatprep.subr.mxu0 0.0
  %818 = vmatpush1.msra.mxu0 0.0
  %819 = vmatprep.subr.mxu0 0.0
  %820 = vmatpush1.msra.mxu0 0.0
  %821 = vmatprep.subr.mxu0 0.0
  %822 = vmatpush1.msra.mxu0 0.0
  %823 = vmatprep.subr.mxu0 0.0
  %824 = vmatpush1.msra.mxu0 0.0
  %825 = vmatprep.subr.mxu0 0.0
  %826 = vmatpush1.msra.mxu0 0.0
  %827 = vmatprep.subr.mxu0 0.0
  %828 = vmatpush1.msra.mxu0 0.0
  %829 = vmatprep.subr.mxu0 0.0
  %830 = vmatpush1.msra.mxu0 0.0
  %831 = vmatprep.subr.mxu0 0.0
  %832 = vmatpush1.msra.mxu0 0.0
  %833 = vmatprep.subr.mxu0 0.0
  %834 = vmatpush1.msra.mxu0 0.0
  %835 = vmatprep.subr.mxu0 0.0
  %836 = vmatpush1.msra.mxu0 0.0
  %837 = vmatprep.subr.mxu0 0.0
  %838 = vmatpush1.msra.mxu0 0.0
  %839 = vmatprep.subr.mxu0 0.0
  %840 = vmatpush1.msra.mxu0 0.0
  %841 = vmatprep.subr.mxu0 0.0
  %842 = vmatpush1.msra.mxu0 0.0
  %843 = vmatprep.mubr.f32.mxu0 0.0
  %844 = vmatmul.mubr.f32.gmra.mrb[0].mxu0 %v777
  %v845 = vpop.f32.mrb[0].mxu0
  %v846 = vadd.f32 0.0, %v845
  %v847 = vpop.f32.mrb[0].mxu0
  %848 = vdwg.mxu0
  %v849 = vadd.f32 %v247, %v846
  %v850 = vtanh.pop %v849
  %v852 = vsel %vm625, %v850, 0
  %854 = vmatprep.subr.mxu0 0.0
  %855 = vmatpush1.msra.mxu0 %v12
  %856 = vmatprep.subr.mxu0 0.0
  %857 = vmatpush1.msra.mxu0 %v13
  %858 = vmatprep.subr.mxu0 0.0
  %859 = vmatpush1.msra.mxu0 %v14
  %860 = vmatprep.subr.mxu0 0.0
  %861 = vmatpush1.msra.mxu0 %v15
  %862 = vmatprep.subr.mxu0 0.0
  %863 = vmatpush1.msra.mxu0 0.0
  %864 = vmatprep.subr.mxu0 0.0
  %865 = vmatpush1.msra.mxu0 0.0
  %866 = vmatprep.subr.mxu0 0.0
  %867 = vmatpush1.msra.mxu0 0.0
  %868 = vmatprep.subr.mxu0 0.0
  %869 = vmatpush1.msra.mxu0 0.0
  %870 = vmatprep.subr.mxu0 0.0
  %871 = vmatpush1.msra.mxu0 0.0
  %872 = vmatprep.subr.mxu0 0.0
  %873 = vmatpush1.msra.mxu0 0.0
  %874 = vmatprep.subr.mxu0 0.0
  %875 = vmatpush1.msra.mxu0 0.0
  %876 = vmatprep.subr.mxu0 0.0
  %877 = vmatpush1.msra.mxu0 0.0
  %878 = vmatprep.subr.mxu0 0.0
  %879 = vmatpush1.msra.mxu0 0.0
  %880 = vmatprep.subr.mxu0 0.0
  %881 = vmatpush1.msra.mxu0 0.0
  %882 = vmatprep.subr.mxu0 0.0
  %883 = vmatpush1.msra.mxu0 0.0
  %884 = vmatprep.subr.mxu0 0.0
  %885 = vmatpush1.msra.mxu0 0.0
  %886 = vmatprep.subr.mxu0 0.0
  %887 = vmatpush1.msra.mxu0 0.0
  %888 = vmatprep.subr.mxu0 0.0
  %889 = vmatpush1.msra.mxu0 0.0
  %890 = vmatprep.subr.mxu0 0.0
  %891 = vmatpush1.msra.mxu0 0.0
  %892 = vmatprep.subr.mxu0 0.0
  %893 = vmatpush1.msra.mxu0 0.0
  %894 = vmatprep.subr.mxu0 0.0
  %895 = vmatpush1.msra.mxu0 0.0
  %896 = vmatprep.subr.mxu0 0.0
  %897 = vmatpush1.msra.mxu0 0.0
  %898 = vmatprep.subr.mxu0 0.0
  %899 = vmatpush1.msra.mxu0 0.0
  %900 = vmatprep.subr.mxu0 0.0
  %901 = vmatpush1.msra.mxu0 0.0
  %902 = vmatprep.subr.mxu0 0.0
  %903 = vmatpush1.msra.mxu0 0.0
  %904 = vmatprep.subr.mxu0 0.0
  %905 = vmatpush1.msra.mxu0 0.0
  %906 = vmatprep.subr.mxu0 0.0
  %907 = vmatpush1.msra.mxu0 0.0
  %908 = vmatprep.subr.mxu0 0.0
  %909 = vmatpush1.msra.mxu0 0.0
  %910 = vmatprep.subr.mxu0 0.0
  %911 = vmatpush1.msra.mxu0 0.0
  %912 = vmatprep.subr.mxu0 0.0
  %913 = vmatpush1.msra.mxu0 0.0
  %914 = vmatprep.subr.mxu0 0.0
  %915 = vmatpush1.msra.mxu0 0.0
  %916 = vmatprep.subr.mxu0 0.0
  %917 = vmatpush1.msra.mxu0 0.0
  %918 = vmatprep.mubr.f32.mxu0 0.0
  %919 = vmatmul.mubr.f32.gmra.mrb[0].mxu0 %v852
  %v920 = vpop.f32.mrb[0].mxu0
  %v921 = vadd.f32 0.0, %v920
  %v922 = vpop.f32.mrb[0].mxu0
  %923 = vdwg.mxu0
  %v924 = vadd.f32 %v322, %v921
  %v925 = vtanh.pop %v924
  %v927 = vsel %vm625, %v925, 0
  %929 = vmatprep.subr.mxu0 0.0
  %930 = vmatpush1.msra.mxu0 %v12
  %931 = vmatprep.subr.mxu0 0.0
  %932 = vmatpush1.msra.mxu0 %v13
  %933 = vmatprep.subr.mxu0 0.0
  %934 = vmatpush1.msra.mxu0 %v14
  %935 = vmatprep.subr.mxu0 0.0
  %936 = vmatpush1.msra.mxu0 %v15
  %937 = vmatprep.subr.mxu0 0.0
  %938 = vmatpush1.msra.mxu0 0.0
  %939 = vmatprep.subr.mxu0 0.0
  %940 = vmatpush1.msra.mxu0 0.0
  %941 = vmatprep.subr.mxu0 0.0
  %942 = vmatpush1.msra.mxu0 0.0
  %943 = vmatprep.subr.mxu0 0.0
  %944 = vmatpush1.msra.mxu0 0.0
  %945 = vmatprep.subr.mxu0 0.0
  %946 = vmatpush1.msra.mxu0 0.0
  %947 = vmatprep.subr.mxu0 0.0
  %948 = vmatpush1.msra.mxu0 0.0
  %949 = vmatprep.subr.mxu0 0.0
  %950 = vmatpush1.msra.mxu0 0.0
  %951 = vmatprep.subr.mxu0 0.0
  %952 = vmatpush1.msra.mxu0 0.0
  %953 = vmatprep.subr.mxu0 0.0
  %954 = vmatpush1.msra.mxu0 0.0
  %955 = vmatprep.subr.mxu0 0.0
  %956 = vmatpush1.msra.mxu0 0.0
  %957 = vmatprep.subr.mxu0 0.0
  %958 = vmatpush1.msra.mxu0 0.0
  %959 = vmatprep.subr.mxu0 0.0
  %960 = vmatpush1.msra.mxu0 0.0
  %961 = vmatprep.subr.mxu0 0.0
  %962 = vmatpush1.msra.mxu0 0.0
  %963 = vmatprep.subr.mxu0 0.0
  %964 = vmatpush1.msra.mxu0 0.0
  %965 = vmatprep.subr.mxu0 0.0
  %966 = vmatpush1.msra.mxu0 0.0
  %967 = vmatprep.subr.mxu0 0.0
  %968 = vmatpush1.msra.mxu0 0.0
  %969 = vmatprep.subr.mxu0 0.0
  %970 = vmatpush1.msra.mxu0 0.0
  %971 = vmatprep.subr.mxu0 0.0
  %972 = vmatpush1.msra.mxu0 0.0
  %973 = vmatprep.subr.mxu0 0.0
  %974 = vmatpush1.msra.mxu0 0.0
  %975 = vmatprep.subr.mxu0 0.0
  %976 = vmatpush1.msra.mxu0 0.0
  %977 = vmatprep.subr.mxu0 0.0
  %978 = vmatpush1.msra.mxu0 0.0
  %979 = vmatprep.subr.mxu0 0.0
  %980 = vmatpush1.msra.mxu0 0.0
  %981 = vmatprep.subr.mxu0 0.0
  %982 = vmatpush1.msra.mxu0 0.0
  %983 = vmatprep.subr.mxu0 0.0
  %984 = vmatpush1.msra.mxu0 0.0
  %985 = vmatprep.subr.mxu0 0.0
  %986 = vmatpush1.msra.mxu0 0.0
  %987 = vmatprep.subr.mxu0 0.0
  %988 = vmatpush1.msra.mxu0 0.0
  %989 = vmatprep.subr.mxu0 0.0
  %990 = vmatpush1.msra.mxu0 0.0
  %991 = vmatprep.subr.mxu0 0.0
  %992 = vmatpush1.msra.mxu0 0.0
  %993 = vmatprep.mubr.f32.mxu0 0.0
  %994 = vmatmul.mubr.f32.gmra.mrb[0].mxu0 %v927
  %v995 = vpop.f32.mrb[0].mxu0
  %v996 = vadd.f32 0.0, %v995
  %v997 = vpop.f32.mrb[0].mxu0
  %998 = vdwg.mxu0
  %v999 = vadd.f32 %v397, %v996
  %v1000 = vtanh.pop %v999
  %v1002 = vsel %vm625, %v1000, 0
  %1004 = vmatprep.subr.mxu0 0.0
  %1005 = vmatpush1.msra.mxu0 %v12
  %1006 = vmatprep.subr.mxu0 0.0
  %1007 = vmatpush1.msra.mxu0 %v13
  %1008 = vmatprep.subr.mxu0 0.0
  %1009 = vmatpush1.msra.mxu0 %v14
  %1010 = vmatprep.subr.mxu0 0.0
  %1011 = vmatpush1.msra.mxu0 %v15
  %1012 = vmatprep.subr.mxu0 0.0
  %1013 = vmatpush1.msra.mxu0 0.0
  %1014 = vmatprep.subr.mxu0 0.0
  %1015 = vmatpush1.msra.mxu0 0.0
  %1016 = vmatprep.subr.mxu0 0.0
  %1017 = vmatpush1.msra.mxu0 0.0
  %1018 = vmatprep.subr.mxu0 0.0
  %1019 = vmatpush1.msra.mxu0 0.0
  %1020 = vmatprep.subr.mxu0 0.0
  %1021 = vmatpush1.msra.mxu0 0.0
  %1022 = vmatprep.subr.mxu0 0.0
  %1023 = vmatpush1.msra.mxu0 0.0
  %1024 = vmatprep.subr.mxu0 0.0
  %1025 = vmatpush1.msra.mxu0 0.0
  %1026 = vmatprep.subr.mxu0 0.0
  %1027 = vmatpush1.msra.mxu0 0.0
  %1028 = vmatprep.subr.mxu0 0.0
  %1029 = vmatpush1.msra.mxu0 0.0
  %1030 = vmatprep.subr.mxu0 0.0
  %1031 = vmatpush1.msra.mxu0 0.0
  %1032 = vmatprep.subr.mxu0 0.0
  %1033 = vmatpush1.msra.mxu0 0.0
  %1034 = vmatprep.subr.mxu0 0.0
  %1035 = vmatpush1.msra.mxu0 0.0
  %1036 = vmatprep.subr.mxu0 0.0
  %1037 = vmatpush1.msra.mxu0 0.0
  %1038 = vmatprep.subr.mxu0 0.0
  %1039 = vmatpush1.msra.mxu0 0.0
  %1040 = vmatprep.subr.mxu0 0.0
  %1041 = vmatpush1.msra.mxu0 0.0
  %1042 = vmatprep.subr.mxu0 0.0
  %1043 = vmatpush1.msra.mxu0 0.0
  %1044 = vmatprep.subr.mxu0 0.0
  %1045 = vmatpush1.msra.mxu0 0.0
  %1046 = vmatprep.subr.mxu0 0.0
  %1047 = vmatpush1.msra.mxu0 0.0
  %1048 = vmatprep.subr.mxu0 0.0
  %1049 = vmatpush1.msra.mxu0 0.0
  %1050 = vmatprep.subr.mxu0 0.0
  %1051 = vmatpush1.msra.mxu0 0.0
  %1052 = vmatprep.subr.mxu0 0.0
  %1053 = vmatpush1.msra.mxu0 0.0
  %1054 = vmatprep.subr.mxu0 0.0
  %1055 = vmatpush1.msra.mxu0 0.0
  %1056 = vmatprep.subr.mxu0 0.0
  %1057 = vmatpush1.msra.mxu0 0.0
  %1058 = vmatprep.subr.mxu0 0.0
  %1059 = vmatpush1.msra.mxu0 0.0
  %1060 = vmatprep.subr.mxu0 0.0
  %1061 = vmatpush1.msra.mxu0 0.0
  %1062 = vmatprep.subr.mxu0 0.0
  %1063 = vmatpush1.msra.mxu0 0.0
  %1064 = vmatprep.subr.mxu0 0.0
  %1065 = vmatpush1.msra.mxu0 0.0
  %1066 = vmatprep.subr.mxu0 0.0
  %1067 = vmatpush1.msra.mxu0 0.0
  %1068 = vmatprep.mubr.f32.mxu0 0.0
  %1069 = vmatmul.mubr.f32.gmra.mrb[0].mxu0 %v1002
  %v1070 = vpop.f32.mrb[0].mxu0
  %v1071 = vadd.f32 0.0, %v1070
  %v1072 = vpop.f32.mrb[0].mxu0
  %1073 = vdwg.mxu0
  %v1074 = vadd.f32 %v472, %v1071
  %v1075 = vtanh.pop %v1074
  %v1077 = vsel %vm625, %v1075, 0
  %1079 = vmatprep.subr.mxu0 0.0
  %1080 = vmatpush1.msra.mxu0 %v12
  %1081 = vmatprep.subr.mxu0 0.0
  %1082 = vmatpush1.msra.mxu0 %v13
  %1083 = vmatprep.subr.mxu0 0.0
  %1084 = vmatpush1.msra.mxu0 %v14
  %1085 = vmatprep.subr.mxu0 0.0
  %1086 = vmatpush1.msra.mxu0 %v15
  %1087 = vmatprep.subr.mxu0 0.0
  %1088 = vmatpush1.msra.mxu0 0.0
  %1089 = vmatprep.subr.mxu0 0.0
  %1090 = vmatpush1.msra.mxu0 0.0
  %1091 = vmatprep.subr.mxu0 0.0
  %1092 = vmatpush1.msra.mxu0 0.0
  %1093 = vmatprep.subr.mxu0 0.0
  %1094 = vmatpush1.msra.mxu0 0.0
  %1095 = vmatprep.subr.mxu0 0.0
  %1096 = vmatpush1.msra.mxu0 0.0
  %1097 = vmatprep.subr.mxu0 0.0
  %1098 = vmatpush1.msra.mxu0 0.0
  %1099 = vmatprep.subr.mxu0 0.0
  %1100 = vmatpush1.msra.mxu0 0.0
  %1101 = vmatprep.subr.mxu0 0.0
  %1102 = vmatpush1.msra.mxu0 0.0
  %1103 = vmatprep.subr.mxu0 0.0
  %1104 = vmatpush1.msra.mxu0 0.0
  %1105 = vmatprep.subr.mxu0 0.0
  %1106 = vmatpush1.msra.mxu0 0.0
  %1107 = vmatprep.subr.mxu0 0.0
  %1108 = vmatpush1.msra.mxu0 0.0
  %1109 = vmatprep.subr.mxu0 0.0
  %1110 = vmatpush1.msra.mxu0 0.0
  %1111 = vmatprep.subr.mxu0 0.0
  %1112 = vmatpush1.msra.mxu0 0.0
  %1113 = vmatprep.subr.mxu0 0.0
  %1114 = vmatpush1.msra.mxu0 0.0
  %1115 = vmatprep.subr.mxu0 0.0
  %1116 = vmatpush1.msra.mxu0 0.0
  %1117 = vmatprep.subr.mxu0 0.0
  %1118 = vmatpush1.msra.mxu0 0.0
  %1119 = vmatprep.subr.mxu0 0.0
  %1120 = vmatpush1.msra.mxu0 0.0
  %1121 = vmatprep.subr.mxu0 0.0
  %1122 = vmatpush1.msra.mxu0 0.0
  %1123 = vmatprep.subr.mxu0 0.0
  %1124 = vmatpush1.msra.mxu0 0.0
  %1125 = vmatprep.subr.mxu0 0.0
  %1126 = vmatpush1.msra.mxu0 0.0
  %1127 = vmatprep.subr.mxu0 0.0
  %1128 = vmatpush1.msra.mxu0 0.0
  %1129 = vmatprep.subr.mxu0 0.0
  %1130 = vmatpush1.msra.mxu0 0.0
  %1131 = vmatprep.subr.mxu0 0.0
  %1132 = vmatpush1.msra.mxu0 0.0
  %1133 = vmatprep.subr.mxu0 0.0
  %1134 = vmatpush1.msra.mxu0 0.0
  %1135 = vmatprep.subr.mxu0 0.0
  %1136 = vmatpush1.msra.mxu0 0.0
  %1137 = vmatprep.subr.mxu0 0.0
  %1138 = vmatpush1.msra.mxu0 0.0
  %1139 = vmatprep.subr.mxu0 0.0
  %1140 = vmatpush1.msra.mxu0 0.0
  %1141 = vmatprep.subr.mxu0 0.0
  %1142 = vmatpush1.msra.mxu0 0.0
  %1143 = vmatprep.mubr.f32.mxu0 0.0
  %1144 = vmatmul.mubr.f32.gmra.mrb[0].mxu0 %v1077
  %v1145 = vpop.f32.mrb[0].mxu0
  %v1146 = vadd.f32 0.0, %v1145
  %v1147 = vpop.f32.mrb[0].mxu0
  %1148 = vdwg.mxu0
  %v1149 = vadd.f32 %v547, %v1146
  %v1150 = vtanh.pop %v1149
  %v1152 = vsel %vm625, %v1150, 0
  %1154 = vmatprep.subr.mxu0 0.0
  %1155 = vmatpush1.msra.mxu0 %v12
  %1156 = vmatprep.subr.mxu0 0.0
  %1157 = vmatpush1.msra.mxu0 %v13
  %1158 = vmatprep.subr.mxu0 0.0
  %1159 = vmatpush1.msra.mxu0 %v14
  %1160 = vmatprep.subr.mxu0 0.0
  %1161 = vmatpush1.msra.mxu0 %v15
  %1162 = vmatprep.subr.mxu0 0.0
  %1163 = vmatpush1.msra.mxu0 0.0
  %1164 = vmatprep.subr.mxu0 0.0
  %1165 = vmatpush1.msra.mxu0 0.0
  %1166 = vmatprep.subr.mxu0 0.0
  %1167 = vmatpush1.msra.mxu0 0.0
  %1168 = vmatprep.subr.mxu0 0.0
  %1169 = vmatpush1.msra.mxu0 0.0
  %1170 = vmatprep.subr.mxu0 0.0
  %1171 = vmatpush1.msra.mxu0 0.0
  %1172 = vmatprep.subr.mxu0 0.0
  %1173 = vmatpush1.msra.mxu0 0.0
  %1174 = vmatprep.subr.mxu0 0.0
  %1175 = vmatpush1.msra.mxu0 0.0
  %1176 = vmatprep.subr.mxu0 0.0
  %1177 = vmatpush1.msra.mxu0 0.0
  %1178 = vmatprep.subr.mxu0 0.0
  %1179 = vmatpush1.msra.mxu0 0.0
  %1180 = vmatprep.subr.mxu0 0.0
  %1181 = vmatpush1.msra.mxu0 0.0
  %1182 = vmatprep.subr.mxu0 0.0
  %1183 = vmatpush1.msra.mxu0 0.0
  %1184 = vmatprep.subr.mxu0 0.0
  %1185 = vmatpush1.msra.mxu0 0.0
  %1186 = vmatprep.subr.mxu0 0.0
  %1187 = vmatpush1.msra.mxu0 0.0
  %1188 = vmatprep.subr.mxu0 0.0
  %1189 = vmatpush1.msra.mxu0 0.0
  %1190 = vmatprep.subr.mxu0 0.0
  %1191 = vmatpush1.msra.mxu0 0.0
  %1192 = vmatprep.subr.mxu0 0.0
  %1193 = vmatpush1.msra.mxu0 0.0
  %1194 = vmatprep.subr.mxu0 0.0
  %1195 = vmatpush1.msra.mxu0 0.0
  %1196 = vmatprep.subr.mxu0 0.0
  %1197 = vmatpush1.msra.mxu0 0.0
  %1198 = vmatprep.subr.mxu0 0.0
  %1199 = vmatpush1.msra.mxu0 0.0
  %1200 = vmatprep.subr.mxu0 0.0
  %1201 = vmatpush1.msra.mxu0 0.0
  %1202 = vmatprep.subr.mxu0 0.0
  %1203 = vmatpush1.msra.mxu0 0.0
  %1204 = vmatprep.subr.mxu0 0.0
  %1205 = vmatpush1.msra.mxu0 0.0
  %1206 = vmatprep.subr.mxu0 0.0
  %1207 = vmatpush1.msra.mxu0 0.0
  %1208 = vmatprep.subr.mxu0 0.0
  %1209 = vmatpush1.msra.mxu0 0.0
  %1210 = vmatprep.subr.mxu0 0.0
  %1211 = vmatpush1.msra.mxu0 0.0
  %1212 = vmatprep.subr.mxu0 0.0
  %1213 = vmatpush1.msra.mxu0 0.0
  %1214 = vmatprep.subr.mxu0 0.0
  %1215 = vmatpush1.msra.mxu0 0.0
  %1216 = vmatprep.subr.mxu0 0.0
  %1217 = vmatpush1.msra.mxu0 0.0
  %1218 = vmatprep.mubr.f32.mxu0 0.0
  %1219 = vmatmul.mubr.f32.gmra.mrb[0].mxu0 %v1152
  %v1220 = vpop.f32.mrb[0].mxu0
  %v1221 = vadd.f32 0.0, %v1220
  %v1222 = vpop.f32.mrb[0].mxu0
  %1223 = vdwg.mxu0
  %v1224 = vadd.f32 %v622, %v1221
  %v1225 = vtanh.pop %v1224
  %v1226 = vld [vmem:[%s1 + $0x30] sm:$0xff]
  %v1227 = vld [vmem:[%s1 + $0x38] sm:$0xff]
  %v1228 = vld [vmem:[%s1 + $0x40] sm:$0xff]
  %v1229 = vld [vmem:[%s1 + $0x48] sm:$0xff]
  %v1230 = vld [vmem:[%s1 + $0x50] sm:$0x1]
  %v1231 = vlaneseq
  %v1232 = vshrl.u32 %v1231, 7
  %v1233 = vsub.s32 0, %v1232
  %v1234 = vrot.slane %v1230, %v1233
  %v1236 = vsel %vm625, %v1225, 0
  %1238 = vmatprep.subr.mxu0 0.0
  %1239 = vmatpush1.msra.mxu0 %v1226
  %1240 = vmatprep.subr.mxu0 0.0
  %1241 = vmatpush1.msra.mxu0 %v1227
  %1242 = vmatprep.subr.mxu0 0.0
  %1243 = vmatpush1.msra.mxu0 %v1228
  %1244 = vmatprep.subr.mxu0 0.0
  %1245 = vmatpush1.msra.mxu0 %v1229
  %1246 = vmatprep.subr.mxu0 0.0
  %1247 = vmatpush1.msra.mxu0 0.0
  %1248 = vmatprep.subr.mxu0 0.0
  %1249 = vmatpush1.msra.mxu0 0.0
  %1250 = vmatprep.subr.mxu0 0.0
  %1251 = vmatpush1.msra.mxu0 0.0
  %1252 = vmatprep.subr.mxu0 0.0
  %1253 = vmatpush1.msra.mxu0 0.0
  %1254 = vmatprep.subr.mxu0 0.0
  %1255 = vmatpush1.msra.mxu0 0.0
  %1256 = vmatprep.subr.mxu0 0.0
  %1257 = vmatpush1.msra.mxu0 0.0
  %1258 = vmatprep.subr.mxu0 0.0
  %1259 = vmatpush1.msra.mxu0 0.0
  %1260 = vmatprep.subr.mxu0 0.0
  %1261 = vmatpush1.msra.mxu0 0.0
  %1262 = vmatprep.subr.mxu0 0.0
  %1263 = vmatpush1.msra.mxu0 0.0
  %1264 = vmatprep.subr.mxu0 0.0
  %1265 = vmatpush1.msra.mxu0 0.0
  %1266 = vmatprep.subr.mxu0 0.0
  %1267 = vmatpush1.msra.mxu0 0.0
  %1268 = vmatprep.subr.mxu0 0.0
  %1269 = vmatpush1.msra.mxu0 0.0
  %1270 = vmatprep.subr.mxu0 0.0
  %1271 = vmatpush1.msra.mxu0 0.0
  %1272 = vmatprep.subr.mxu0 0.0
  %1273 = vmatpush1.msra.mxu0 0.0
  %1274 = vmatprep.subr.mxu0 0.0
  %1275 = vmatpush1.msra.mxu0 0.0
  %1276 = vmatprep.subr.mxu0 0.0
  %1277 = vmatpush1.msra.mxu0 0.0
  %1278 = vmatprep.subr.mxu0 0.0
  %1279 = vmatpush1.msra.mxu0 0.0
  %1280 = vmatprep.subr.mxu0 0.0
  %1281 = vmatpush1.msra.mxu0 0.0
  %1282 = vmatprep.subr.mxu0 0.0
  %1283 = vmatpush1.msra.mxu0 0.0
  %1284 = vmatprep.subr.mxu0 0.0
  %1285 = vmatpush1.msra.mxu0 0.0
  %1286 = vmatprep.subr.mxu0 0.0
  %1287 = vmatpush1.msra.mxu0 0.0
  %1288 = vmatprep.subr.mxu0 0.0
  %1289 = vmatpush1.msra.mxu0 0.0
  %1290 = vmatprep.subr.mxu0 0.0
  %1291 = vmatpush1.msra.mxu0 0.0
  %1292 = vmatprep.subr.mxu0 0.0
  %1293 = vmatpush1.msra.mxu0 0.0
  %1294 = vmatprep.subr.mxu0 0.0
  %1295 = vmatpush1.msra.mxu0 0.0
  %1296 = vmatprep.subr.mxu0 0.0
  %1297 = vmatpush1.msra.mxu0 0.0
  %1298 = vmatprep.subr.mxu0 0.0
  %1299 = vmatpush1.msra.mxu0 0.0
  %1300 = vmatprep.subr.mxu0 0.0
  %1301 = vmatpush1.msra.mxu0 0.0
  %1302 = vmatprep.mubr.f32.mxu0 0.0
  %1303 = vmatmul.mubr.f32.gmra.mrb[0].mxu0 %v1236
  %v1304 = vpop.f32.mrb[0].mxu0
  %v1305 = vadd.f32 %v1234, %v1304
  %v1306 = vpop.f32.mrb[0].mxu0
  %1307 = vdwg.mxu0
  %v1308 = vmax.f32 %v1305, 0.0
  %v1309 = vld [vmem:[%s1 + $0x58] sm:$0xff]
  %v1310 = vld [vmem:[%s1 + $0x60] sm:$0xff]
  %v1311 = vld [vmem:[%s1 + $0x68] sm:$0x1]
  %v1312 = vlaneseq
  %v1313 = vshrl.u32 %v1312, 7
  %v1314 = vsub.s32 0, %v1313
  %v1315 = vrot.slane %v1311, %v1314
  %vm1316 = vcmask 130048
  %v1318 = vsel %vm1316, %v1308, 0
  %1320 = vmatprep.subr.mxu0 0.0
  %1321 = vmatpush1.msra.mxu0 %v1309
  %1322 = vmatprep.subr.mxu0 0.0
  %1323 = vmatpush1.msra.mxu0 %v1310
  %1324 = vmatprep.subr.mxu0 0.0
  %1325 = vmatpush1.msra.mxu0 0.0
  %1326 = vmatprep.subr.mxu0 0.0
  %1327 = vmatpush1.msra.mxu0 0.0
  %1328 = vmatprep.subr.mxu0 0.0
  %1329 = vmatpush1.msra.mxu0 0.0
  %1330 = vmatprep.subr.mxu0 0.0
  %1331 = vmatpush1.msra.mxu0 0.0
  %1332 = vmatprep.subr.mxu0 0.0
  %1333 = vmatpush1.msra.mxu0 0.0
  %1334 = vmatprep.subr.mxu0 0.0
  %1335 = vmatpush1.msra.mxu0 0.0
  %1336 = vmatprep.subr.mxu0 0.0
  %1337 = vmatpush1.msra.mxu0 0.0
  %1338 = vmatprep.subr.mxu0 0.0
  %1339 = vmatpush1.msra.mxu0 0.0
  %1340 = vmatprep.subr.mxu0 0.0
  %1341 = vmatpush1.msra.mxu0 0.0
  %1342 = vmatprep.subr.mxu0 0.0
  %1343 = vmatpush1.msra.mxu0 0.0
  %1344 = vmatprep.subr.mxu0 0.0
  %1345 = vmatpush1.msra.mxu0 0.0
  %1346 = vmatprep.subr.mxu0 0.0
  %1347 = vmatpush1.msra.mxu0 0.0
  %1348 = vmatprep.subr.mxu0 0.0
  %1349 = vmatpush1.msra.mxu0 0.0
  %1350 = vmatprep.subr.mxu0 0.0
  %1351 = vmatpush1.msra.mxu0 0.0
  %1352 = vmatprep.subr.mxu0 0.0
  %1353 = vmatpush1.msra.mxu0 0.0
  %1354 = vmatprep.subr.mxu0 0.0
  %1355 = vmatpush1.msra.mxu0 0.0
  %1356 = vmatprep.subr.mxu0 0.0
  %1357 = vmatpush1.msra.mxu0 0.0
  %1358 = vmatprep.subr.mxu0 0.0
  %1359 = vmatpush1.msra.mxu0 0.0
  %1360 = vmatprep.subr.mxu0 0.0
  %1361 = vmatpush1.msra.mxu0 0.0
  %1362 = vmatprep.subr.mxu0 0.0
  %1363 = vmatpush1.msra.mxu0 0.0
  %1364 = vmatprep.subr.mxu0 0.0
  %1365 = vmatpush1.msra.mxu0 0.0
  %1366 = vmatprep.subr.mxu0 0.0
  %1367 = vmatpush1.msra.mxu0 0.0
  %1368 = vmatprep.subr.mxu0 0.0
  %1369 = vmatpush1.msra.mxu0 0.0
  %1370 = vmatprep.subr.mxu0 0.0
  %1371 = vmatpush1.msra.mxu0 0.0
  %1372 = vmatprep.subr.mxu0 0.0
  %1373 = vmatpush1.msra.mxu0 0.0
  %1374 = vmatprep.subr.mxu0 0.0
  %1375 = vmatpush1.msra.mxu0 0.0
  %1376 = vmatprep.subr.mxu0 0.0
  %1377 = vmatpush1.msra.mxu0 0.0
  %1378 = vmatprep.subr.mxu0 0.0
  %1379 = vmatpush1.msra.mxu0 0.0
  %1380 = vmatprep.subr.mxu0 0.0
  %1381 = vmatpush1.msra.mxu0 0.0
  %1382 = vmatprep.subr.mxu0 0.0
  %1383 = vmatpush1.msra.mxu0 0.0
  %1384 = vmatprep.mubr.f32.mxu0 0.0
  %1385 = vmatmul.mubr.f32.gmra.mrb[0].mxu0 %v1318
  %v1386 = vpop.f32.mrb[0].mxu0
  %v1387 = vadd.f32 %v1315, %v1386
  %v1388 = vpop.f32.mrb[0].mxu0
  %1389 = vdwg.mxu0
  %vm1390 = vcmask 1024
  %1391 = vst.msk [vmem:[%s2] sm:$0x3] %vm1390, %v1387
  // Predicated region
  $region10: #{rnn_regressor_forward.1} parent=0 // pred_check
    _
  $region11: #{rnn_regressor_forward.1} parent=0 // pred_check_branch
    %1393 = sbr.rel (0) target = $region13
  $region12: #{rnn_regressor_forward.1} parent=0 // pred_region
    _
  $region13: #{rnn_regressor_forward.1} parent=0 // pred_fallthru
    _
  // Predicated region
  $region14: #{rnn_regressor_forward.1} parent=0 // pred_check
    _
  $region15: #{rnn_regressor_forward.1} parent=0 // pred_check_branch
    %1395 = sbr.rel (0) target = $region17
  $region16: #{rnn_regressor_forward.1} parent=0 // pred_region
    _
  $region17: #{rnn_regressor_forward.1} parent=0 // pred_fallthru
    _

</llo_original>
